<compile_context>
chip_gen: v7x
topology: tpu7x:2x2x1
jax: 0.10.0
libtpu: 0.0.40
codegen_flags: <defaults>
</compile_context>

<pallas_src>
import jax
import jax.numpy as jnp
from jax.experimental import pallas as pl
from jax.experimental.pallas import tpu as pltpu


def _round_up(x, m):
    return ((x + m - 1) // m) * m


def _make_kernel(K, Lt, pad_cols):
    def kernel(x_main_ref, x_halo_ref, w_ref, out_ref):
        # x_main_ref: (Lt, C)   bf16  rows [m*Lt, m*Lt+Lt) of the padded NLC input
        # x_halo_ref: (32, C)   bf16  rows [(m+1)*Lt, (m+1)*Lt+32)  (conv halo, >= K-1 rows)
        # w_ref     : (KCp, rC) bf16  unfolded conv weight, pixel-shuffle-permuted columns
        # out_ref   : (Lt, rC)  f32
        slab = jnp.concatenate([x_main_ref[...], x_halo_ref[...]], axis=0)   # (Lt+32, C)
        pieces = [slab[k:k + Lt, :] for k in range(K)]        # im2col built in VMEM only
        if pad_cols:
            pieces.append(jnp.zeros((Lt, pad_cols), slab.dtype))
        im2col = jnp.concatenate(pieces, axis=1)              # (Lt, KCp), lane-aligned
        acc = jnp.dot(im2col, w_ref[...], preferred_element_type=jnp.float32)
        out_ref[...] = jnp.maximum(acc, 0.0).astype(out_ref.dtype)
    return kernel


def subpixel_forward(x_ncl, w, upsample=2):
    """x_ncl: (N, C, L) like PyTorch.  w: (r*C, C, K) like nn.Conv1d.weight (bias=False)."""
    N, C, L = x_ncl.shape
    Cout, Cin, K = w.shape
    r = upsample
    assert Cin == C and Cout == r * C
    P = (K - 1) // 2

    HALO = 32                                    # >= K-1, multiple of 32
    assert K - 1 <= HALO
    Lt = min(256, _round_up(max(L, 8), 32))      # M tile: 256 rows fills an MXU pass
    num_tiles = (L + Lt - 1) // Lt
    Lp = num_tiles * Lt

    # channels-last + single bf16 cast; conv zero-pad and tile/halo tail pad folded into ONE pad
    x_nlc = jnp.transpose(x_ncl, (0, 2, 1)).astype(jnp.bfloat16)         # (N, L, C)
    xp = jnp.pad(x_nlc, ((0, 0), (P, Lp + HALO - P - L), (0, 0)))        # (N, Lp+HALO, C)

    # weight: w[c*r+j, i, k] -> matrix [k*C+i, j*C+c]; contraction zero-padded to KCp (exact)
    KC = K * C
    KCp = _round_up(KC, 256)
    w_mat = jnp.transpose(w.reshape(C, r, C, K), (3, 2, 1, 0)).reshape(KC, r * C)
    w_mat = jnp.pad(w_mat, ((0, KCp - KC), (0, 0))).astype(jnp.bfloat16)

    kernel = _make_kernel(K, Lt, KCp - KC)

    out_nlo = pl.pallas_call(
        kernel,
        out_shape=jax.ShapeDtypeStruct((N, Lp, r * C), jnp.float32),
        grid_spec=pl.GridSpec(
            grid=(N, num_tiles),
            in_specs=[
                pl.BlockSpec((pl.Squeezed(), Lt, C), lambda n, m: (n, m, 0)),
                pl.BlockSpec((pl.Squeezed(), HALO, C),
                             lambda n, m: (n, (m + 1) * (Lt // HALO), 0)),
                pl.BlockSpec((KCp, r * C), lambda n, m: (0, 0)),   # invariant: fetched once
            ],
            out_specs=pl.BlockSpec((pl.Squeezed(), Lt, r * C), lambda n, m: (n, m, 0)),
        ),
        compiler_params=pltpu.CompilerParams(
            dimension_semantics=("parallel", "parallel"),
            vmem_limit_bytes=32 * 1024 * 1024),
    )(xp, xp, w_mat)

    # pixel shuffle is a free reshape thanks to the weight-column permutation:
    #   out_nlo[n, l, j*C + c] == relu(conv[n, c*r + j, l]) == y[n, c, l*r + j]
    y_nlc = out_nlo[:, :L, :].reshape(N, r * L, C)
    # TODO(synk): if the consumer accepts channels-last output, return y_nlc here and drop
    #             this final full-HBM transpose pass (kept for PyTorch NCL parity).
    return jnp.transpose(y_nlc, (0, 2, 1))                               # (N, C, r*L)


def subpixel_reference(x, w, upsample=2):
    """Plain-JAX reference matching the PyTorch forward (NCL layout)."""
    N, C, L = x.shape
    K = w.shape[-1]
    P = (K - 1) // 2
    r = upsample
    conv = jax.lax.conv_general_dilated(
        x, w, window_strides=(1,), padding=[(P, P)],
        dimension_numbers=('NCH', 'OIH', 'NCH'),
        precision=jax.lax.Precision.HIGHEST)                             # (N, r*C, L)
    ps = conv.reshape(N, C, r, L).transpose(0, 1, 3, 2).reshape(N, C, r * L)
    return jax.nn.relu(ps)


if __name__ == "__main__":
    # module defaults: n_channels=64, upsample=2, kernel_size=27; small batch/length
    N, C, L, K, r = 2, 64, 32, 27, 2

    key = jax.random.PRNGKey(0)
    kx, kw = jax.random.split(key)

    # Conv1d weight: kaiming-uniform-like bound = 1/sqrt(C*K), bias=False.
    bound = 1.0 / jnp.sqrt(jnp.float32(C * K))
    x = jax.random.normal(kx, (N, C, L), jnp.float32)
    w = jax.random.uniform(kw, (r * C, C, K), jnp.float32, -bound, bound)

    out = subpixel_forward(x, w, upsample=r)
    out = jax.block_until_ready(out)

    ref = subpixel_reference(x, w, upsample=r)
    assert out.shape == (N, C, r * L)
    assert jnp.allclose(out, ref, atol=3e-2, rtol=3e-2), \
        f"max abs err {jnp.max(jnp.abs(out - ref))}"

    print("KERNEL_OK")
</pallas_src>

<mosaic_0001>
module attributes {stable_mosaic.version = 11 : i64} {
  func.func @kernel(%arg0: i32, %arg1: i32, %arg2: memref<1x32x64xbf16, #tpu.memory_space<vmem>>, %arg3: memref<1x32x64xbf16, #tpu.memory_space<vmem>>, %arg4: memref<1792x128xbf16, #tpu.memory_space<vmem>>, %arg5: memref<1x32x128xf32, #tpu.memory_space<vmem>>) attributes {dimension_semantics = [#tpu.dimension_semantics<parallel>, #tpu.dimension_semantics<parallel>], iteration_bounds = array<i64: 2, 1>, scalar_prefetch = 0 : i64, scratch_operands = 0 : i64, tpu.core_type = #tpu.core_type<tc>, window_params = [{transform_indices = @transform_0, window_bounds = array<i64: 1, 32, 64>}, {transform_indices = @transform_1, window_bounds = array<i64: 1, 32, 64>}, {pipeline_mode = #tpu.pipeline_mode<synchronous>, transform_indices = @transform_2, window_bounds = array<i64: 1792, 128>}, {transform_indices = @transform_3, window_bounds = array<i64: 1, 32, 128>}]} {
    %c0 = arith.constant 0 : index
    %c0_0 = arith.constant 0 : index
    %c0_1 = arith.constant 0 : index
    %0 = vector.load %arg2[%c0, %c0_0, %c0_1] : memref<1x32x64xbf16, #tpu.memory_space<vmem>>, vector<1x32x64xbf16>
    %1 = vector.shape_cast %0 : vector<1x32x64xbf16> to vector<32x64xbf16>
    %c0_2 = arith.constant 0 : index
    %c0_3 = arith.constant 0 : index
    %c0_4 = arith.constant 0 : index
    %2 = vector.load %arg3[%c0_2, %c0_3, %c0_4] : memref<1x32x64xbf16, #tpu.memory_space<vmem>>, vector<1x32x64xbf16>
    %3 = vector.shape_cast %2 : vector<1x32x64xbf16> to vector<32x64xbf16>
    %4 = tpu.concatenate %1, %3 in 0 : vector<32x64xbf16>, vector<32x64xbf16> -> vector<64x64xbf16>
    %5 = vector.extract_strided_slice %4 {offsets = [0, 0], sizes = [32, 64], strides = [1, 1]} : vector<64x64xbf16> to vector<32x64xbf16>
    %6 = vector.extract_strided_slice %4 {offsets = [1, 0], sizes = [32, 64], strides = [1, 1]} : vector<64x64xbf16> to vector<32x64xbf16>
    %7 = vector.extract_strided_slice %4 {offsets = [2, 0], sizes = [32, 64], strides = [1, 1]} : vector<64x64xbf16> to vector<32x64xbf16>
    %8 = vector.extract_strided_slice %4 {offsets = [3, 0], sizes = [32, 64], strides = [1, 1]} : vector<64x64xbf16> to vector<32x64xbf16>
    %9 = vector.extract_strided_slice %4 {offsets = [4, 0], sizes = [32, 64], strides = [1, 1]} : vector<64x64xbf16> to vector<32x64xbf16>
    %10 = vector.extract_strided_slice %4 {offsets = [5, 0], sizes = [32, 64], strides = [1, 1]} : vector<64x64xbf16> to vector<32x64xbf16>
    %11 = vector.extract_strided_slice %4 {offsets = [6, 0], sizes = [32, 64], strides = [1, 1]} : vector<64x64xbf16> to vector<32x64xbf16>
    %12 = vector.extract_strided_slice %4 {offsets = [7, 0], sizes = [32, 64], strides = [1, 1]} : vector<64x64xbf16> to vector<32x64xbf16>
    %13 = vector.extract_strided_slice %4 {offsets = [8, 0], sizes = [32, 64], strides = [1, 1]} : vector<64x64xbf16> to vector<32x64xbf16>
    %14 = vector.extract_strided_slice %4 {offsets = [9, 0], sizes = [32, 64], strides = [1, 1]} : vector<64x64xbf16> to vector<32x64xbf16>
    %15 = vector.extract_strided_slice %4 {offsets = [10, 0], sizes = [32, 64], strides = [1, 1]} : vector<64x64xbf16> to vector<32x64xbf16>
    %16 = vector.extract_strided_slice %4 {offsets = [11, 0], sizes = [32, 64], strides = [1, 1]} : vector<64x64xbf16> to vector<32x64xbf16>
    %17 = vector.extract_strided_slice %4 {offsets = [12, 0], sizes = [32, 64], strides = [1, 1]} : vector<64x64xbf16> to vector<32x64xbf16>
    %18 = vector.extract_strided_slice %4 {offsets = [13, 0], sizes = [32, 64], strides = [1, 1]} : vector<64x64xbf16> to vector<32x64xbf16>
    %19 = vector.extract_strided_slice %4 {offsets = [14, 0], sizes = [32, 64], strides = [1, 1]} : vector<64x64xbf16> to vector<32x64xbf16>
    %20 = vector.extract_strided_slice %4 {offsets = [15, 0], sizes = [32, 64], strides = [1, 1]} : vector<64x64xbf16> to vector<32x64xbf16>
    %21 = vector.extract_strided_slice %4 {offsets = [16, 0], sizes = [32, 64], strides = [1, 1]} : vector<64x64xbf16> to vector<32x64xbf16>
    %22 = vector.extract_strided_slice %4 {offsets = [17, 0], sizes = [32, 64], strides = [1, 1]} : vector<64x64xbf16> to vector<32x64xbf16>
    %23 = vector.extract_strided_slice %4 {offsets = [18, 0], sizes = [32, 64], strides = [1, 1]} : vector<64x64xbf16> to vector<32x64xbf16>
    %24 = vector.extract_strided_slice %4 {offsets = [19, 0], sizes = [32, 64], strides = [1, 1]} : vector<64x64xbf16> to vector<32x64xbf16>
    %25 = vector.extract_strided_slice %4 {offsets = [20, 0], sizes = [32, 64], strides = [1, 1]} : vector<64x64xbf16> to vector<32x64xbf16>
    %26 = vector.extract_strided_slice %4 {offsets = [21, 0], sizes = [32, 64], strides = [1, 1]} : vector<64x64xbf16> to vector<32x64xbf16>
    %27 = vector.extract_strided_slice %4 {offsets = [22, 0], sizes = [32, 64], strides = [1, 1]} : vector<64x64xbf16> to vector<32x64xbf16>
    %28 = vector.extract_strided_slice %4 {offsets = [23, 0], sizes = [32, 64], strides = [1, 1]} : vector<64x64xbf16> to vector<32x64xbf16>
    %29 = vector.extract_strided_slice %4 {offsets = [24, 0], sizes = [32, 64], strides = [1, 1]} : vector<64x64xbf16> to vector<32x64xbf16>
    %30 = vector.extract_strided_slice %4 {offsets = [25, 0], sizes = [32, 64], strides = [1, 1]} : vector<64x64xbf16> to vector<32x64xbf16>
    %31 = vector.extract_strided_slice %4 {offsets = [26, 0], sizes = [32, 64], strides = [1, 1]} : vector<64x64xbf16> to vector<32x64xbf16>
    %cst = arith.constant 0.000000e+00 : bf16
    %32 = vector.broadcast %cst : bf16 to vector<32x64xbf16>
    %33 = tpu.concatenate %5, %6, %7, %8, %9, %10, %11, %12, %13, %14, %15, %16, %17, %18, %19, %20 in 1 : vector<32x64xbf16>, vector<32x64xbf16>, vector<32x64xbf16>, vector<32x64xbf16>, vector<32x64xbf16>, vector<32x64xbf16>, vector<32x64xbf16>, vector<32x64xbf16>, vector<32x64xbf16>, vector<32x64xbf16>, vector<32x64xbf16>, vector<32x64xbf16>, vector<32x64xbf16>, vector<32x64xbf16>, vector<32x64xbf16>, vector<32x64xbf16> -> vector<32x1024xbf16>
    %34 = tpu.concatenate %21, %22, %23, %24, %25, %26, %27, %28, %29, %30, %31, %32 in 1 : vector<32x64xbf16>, vector<32x64xbf16>, vector<32x64xbf16>, vector<32x64xbf16>, vector<32x64xbf16>, vector<32x64xbf16>, vector<32x64xbf16>, vector<32x64xbf16>, vector<32x64xbf16>, vector<32x64xbf16>, vector<32x64xbf16>, vector<32x64xbf16> -> vector<32x768xbf16>
    %35 = tpu.concatenate %33, %34 in 1 : vector<32x1024xbf16>, vector<32x768xbf16> -> vector<32x1792xbf16>
    %c0_5 = arith.constant 0 : index
    %c0_6 = arith.constant 0 : index
    %36 = vector.load %arg4[%c0_5, %c0_6] : memref<1792x128xbf16, #tpu.memory_space<vmem>>, vector<1792x128xbf16>
    %cst_7 = arith.constant dense<0.000000e+00> : vector<32x128xf32>
    %37 = tpu.matmul %35, %36, %cst_7 {dimension_numbers = #tpu.dot_dimension_numbers<[1], [0], [0], [1], [0, 0, 1, 1], [], []>} : vector<32x1792xbf16>, vector<1792x128xbf16>, vector<32x128xf32> -> vector<32x128xf32>
    %cst_8 = arith.constant 0.000000e+00 : f32
    %38 = vector.broadcast %cst_8 : f32 to vector<32x128xf32>
    %39 = arith.maximumf %37, %38 : vector<32x128xf32>
    %c0_9 = arith.constant 0 : index
    %c0_10 = arith.constant 0 : index
    %c0_11 = arith.constant 0 : index
    %40 = vector.load %arg5[%c0_9, %c0_10, %c0_11] : memref<1x32x128xf32, #tpu.memory_space<vmem>>, vector<1x32x128xf32>
    %41 = vector.shape_cast %40 : vector<1x32x128xf32> to vector<32x128xf32>
    %42 = vector.shape_cast %39 : vector<32x128xf32> to vector<1x32x128xf32>
    tpu.vector_store %arg5[%c0_9, %c0_10, %c0_11], %42 {strides = array<i32>} : memref<1x32x128xf32, #tpu.memory_space<vmem>>, vector<1x32x128xf32>,
    return
  }
  func.func @transform_0(%arg0: i32, %arg1: i32) -> (i32, i32, i32) {
    %c0_i32 = arith.constant 0 : i32
    %c0_i32_0 = arith.constant 0 : i32
    return %arg0, %arg1, %c0_i32 : i32, i32, i32
  }
  func.func @transform_1(%arg0: i32, %arg1: i32) -> (i32, i32, i32) {
    %c1_i32 = arith.constant 1 : i32
    %0 = arith.addi %arg1, %c1_i32 : i32
    %c1_i32_0 = arith.constant 1 : i32
    %1 = arith.muli %0, %c1_i32_0 : i32
    %c0_i32 = arith.constant 0 : i32
    %c0_i32_1 = arith.constant 0 : i32
    return %arg0, %1, %c0_i32 : i32, i32, i32
  }
  func.func @transform_2(%arg0: i32, %arg1: i32) -> (i32, i32) {
    %c0_i32 = arith.constant 0 : i32
    %c0_i32_0 = arith.constant 0 : i32
    %c0_i32_1 = arith.constant 0 : i32
    return %c0_i32, %c0_i32_0 : i32, i32
  }
  func.func @transform_3(%arg0: i32, %arg1: i32) -> (i32, i32, i32) {
    %c0_i32 = arith.constant 0 : i32
    %c0_i32_0 = arith.constant 0 : i32
    return %arg0, %arg1, %c0_i32 : i32, i32, i32
  }
}

</mosaic_0001>

<llo_original>
// kernel: tpu_custom_call.1
$region0: #{tpu_custom_call.1}
  #allocation0 [shape = 'u32[]', space=smem, size = 0x4, offset = 0x4, fixed_abs, tag = 'smem constant byte address 0x4 - core index']
  #allocation1 [shape = 'u32[144,128]{1,0:T(1,128)}', space=vmem, size = 0x12000, scoped, tag = 'internal scratch']
  %s0 = inlined_call_operand.hbm [shape: bf16[2,64,64], index: 0, kind: input, shape index: {}]
  %s1 = inlined_call_operand.hbm [shape: bf16[2,64,64], index: 1, kind: input, shape index: {}]
  %s2 = inlined_call_operand.hbm [shape: bf16[1792,128], index: 2, kind: input, shape index: {}]
  %s3 = inlined_call_operand.hbm [shape: f32[2,32,128], index: 3, kind: output, shape index: {}]
  %s4 = sld [smem:[#allocation0]]
  $region57: #{tpu_custom_call.1} parent=0
    _
  %s6 = ssub.s32 1, %s4
  %s7 = scalar_select 0, %s6, %s4
  $region1: #{tpu_custom_call.1} parent=0
    #allocation2 [shape = 'u8[16384]{0}', space=vmem, size = 0x4000, scoped, tag = 'input window, operand 0']
    #allocation3 [shape = 's32[2]{0}', space=sflag, size = 0x8, scoped, tag = 'scoped memory for tpu_custom_call.1']
    #allocation4 [shape = 's32[2]{0}', space=sflag, size = 0x8, scoped, tag = 'scoped memory for tpu_custom_call.1']
    #allocation5 [shape = 'u8[16384]{0}', space=vmem, size = 0x4000, scoped, tag = 'input window, operand 1']
    #allocation6 [shape = 's32[2]{0}', space=sflag, size = 0x8, scoped, tag = 'scoped memory for tpu_custom_call.1']
    #allocation7 [shape = 'u8[458752]{0}', space=vmem, size = 0x70000, scoped, tag = 'input window, operand 2, single buffered']
    #allocation8 [shape = 'u8[32768]{0}', space=vmem, size = 0x8000, scoped, tag = 'output window, operand 0']
    %8 = vsyncpa [#allocation3], 0
    %s9 = scalar_lea.sflag [#allocation3], 1
    %10 = vsyncpa %s9, 0
    %11 = vsyncpa [#allocation6], 0
    %s12 = scalar_lea.sflag [#allocation6], 1
    %13 = vsyncpa %s12, 0
    %14 = vsyncpa [#allocation4], 0
    %s15 = scalar_lea.sflag [#allocation4], 1
    %16 = vsyncpa %s15, 0
    loop: start=0, step=1, limit=4
    $region2: #{tpu_custom_call.1} parent=1 // loop_pre_header
      _
    $region3: #{tpu_custom_call.1} parent=1 // loop_header
      %s18 = sphi 0, %s22
      %p19 = scmp.ge.s32.totalorder %s18, 4
      %s25 = sphi 0, %s37
      %s26 = sphi 0, %s33
      %s27 = sphi 0, %s25
      %s28 = sphi 0, %s26
      %s29 = sphi 0, %s27
      %s30 = sphi 0, %s28
      %s42 = sphi 0, %s44
      %s45 = sphi 0, %s42
      %s46 = sphi 0, %s45
      %s62 = sphi 0, %s46
      %s72 = sphi 0, %s74
      %s75 = sphi 0, %s72
      %s76 = sphi 0, %s75
      %s92 = sphi 0, %s76
      %s96 = sphi 0, %s96
      %s98 = sphi 0, %s96
      %s99 = sphi 0, %s98
      %s113 = sphi 0, %s99
      %s121 = sphi 0, %s123
      %s124 = sphi 0, %s121
      %s125 = sphi 0, %s124
      %s141 = sphi 0, %s125
    $region4: #{tpu_custom_call.1} parent=1 // loop_header_branch
      %21 = sbr.rel (%p19) target = $region8
    $region5: #{tpu_custom_call.1} parent=1 // loop_body
      %s23 = ssub.s32 %s18, 1
      %s24 = ssub.s32 %s18, 2
      %s31 = sadd.s32 1, %s26
      %p32 = scmp.ge.s32.totalorder %s31, 1
      %s33 = scalar_select %p32, 0, %s31
      %s34 = sadd.s32 1, %s25
      %s35 = scalar_select %p32, %s34, %s25
      %p36 = scmp.ge.s32.totalorder %s35, 2
      %s37 = scalar_select %p36, 0, %s35
      %s38 = ssub.s32 %s25, %s37
      %s39 = ssub.s32 %s26, %s33
      %s40 = sor.u32 %s38, %s39
      %p41 = scmp.eq.s32.totalorder %s40, 0
      %s43 = sadd.s32 %s42, 1
      %s44 = scalar_select %p41, %s42, %s43
      %p47 = pneg %p41
      %p48 = scmp.eq.s32.totalorder %s18, 1
      %p49 = por %p47, %p48
      %p50 = scmp.ne.s32.totalorder %s42, %s45
      %p51 = scmp.eq.s32.totalorder %s18, 0
      %p52 = por %p50, %p51
      %p53 = scmp.ne.s32.totalorder %s42, %s45
      %p54 = scmp.eq.s32.totalorder %s23, 1
      %p55 = por %p53, %p54
      %p56 = scmp.ne.s32.totalorder %s45, %s46
      %p57 = scmp.eq.s32.totalorder %s23, 0
      %p58 = por %p56, %p57
      %p59 = scmp.ne.s32.totalorder %s45, %s46
      %p60 = scmp.eq.s32.totalorder %s24, 1
      %p61 = por %p59, %p60
      %p63 = scmp.ne.s32.totalorder %s46, %s62
      %p64 = scmp.eq.s32.totalorder %s24, 0
      %p65 = por %p63, %p64
      %s66 = sadd.s32 %s26, 1
      %s67 = sadd.s32 %s33, 1
      %s68 = ssub.s32 %s25, %s37
      %s69 = ssub.s32 %s66, %s67
      %s70 = sor.u32 %s68, %s69
      %p71 = scmp.eq.s32.totalorder %s70, 0
      %s73 = sadd.s32 %s72, 1
      %s74 = scalar_select %p71, %s72, %s73
      %p77 = pneg %p71
      %p78 = scmp.eq.s32.totalorder %s18, 1
      %p79 = por %p77, %p78
      %p80 = scmp.ne.s32.totalorder %s72, %s75
      %p81 = scmp.eq.s32.totalorder %s18, 0
      %p82 = por %p80, %p81
      %p83 = scmp.ne.s32.totalorder %s72, %s75
      %p84 = scmp.eq.s32.totalorder %s23, 1
      %p85 = por %p83, %p84
      %p86 = scmp.ne.s32.totalorder %s75, %s76
      %p87 = scmp.eq.s32.totalorder %s23, 0
      %p88 = por %p86, %p87
      %p89 = scmp.ne.s32.totalorder %s75, %s76
      %p90 = scmp.eq.s32.totalorder %s24, 1
      %p91 = por %p89, %p90
      %p93 = scmp.ne.s32.totalorder %s76, %s92
      %p94 = scmp.eq.s32.totalorder %s24, 0
      %p95 = por %p93, %p94
      %s97 = sadd.s32 %s96, 1
      %p100 = scmp.eq.s32.totalorder %s18, 1
      %p101 = scmp.ne.s32.totalorder %s96, %s98
      %p102 = scmp.eq.s32.totalorder %s18, 0
      %p103 = por %p101, %p102
      %p104 = scmp.ne.s32.totalorder %s96, %s98
      %p105 = scmp.eq.s32.totalorder %s23, 1
      %p106 = por %p104, %p105
      %p107 = scmp.ne.s32.totalorder %s98, %s99
      %p108 = scmp.eq.s32.totalorder %s23, 0
      %p109 = por %p107, %p108
      %p110 = scmp.ne.s32.totalorder %s98, %s99
      %p111 = scmp.eq.s32.totalorder %s24, 1
      %p112 = por %p110, %p111
      %p114 = scmp.ne.s32.totalorder %s99, %s113
      %p115 = scmp.eq.s32.totalorder %s24, 0
      %p116 = por %p114, %p115
      %s117 = ssub.s32 %s25, %s37
      %s118 = ssub.s32 %s26, %s33
      %s119 = sor.u32 %s117, %s118
      %p120 = scmp.eq.s32.totalorder %s119, 0
      %s122 = sadd.s32 %s121, 1
      %s123 = scalar_select %p120, %s121, %s122
      %p126 = pneg %p120
      %p127 = scmp.eq.s32.totalorder %s18, 1
      %p128 = por %p126, %p127
      %p129 = scmp.ne.s32.totalorder %s121, %s124
      %p130 = scmp.eq.s32.totalorder %s18, 0
      %p131 = por %p129, %p130
      %p132 = scmp.ne.s32.totalorder %s121, %s124
      %p133 = scmp.eq.s32.totalorder %s23, 1
      %p134 = por %p132, %p133
      %p135 = scmp.ne.s32.totalorder %s124, %s125
      %p136 = scmp.eq.s32.totalorder %s23, 0
      %p137 = por %p135, %p136
      %p138 = scmp.ne.s32.totalorder %s124, %s125
      %p139 = scmp.eq.s32.totalorder %s24, 1
      %p140 = por %p138, %p139
      %p142 = scmp.ne.s32.totalorder %s125, %s141
      %p143 = scmp.eq.s32.totalorder %s24, 0
      %p144 = por %p142, %p143
      %p145 = scmp.le.s32.totalorder 1, %s18
      %p146 = scmp.lt.s32.totalorder %s18, 3
      %p147 = pnand %p145, %p146
      %p148 = pneg %p147
      // Predicated region
      $region9: #{tpu_custom_call.1} parent=5 // pred_check
        _
      $region10: #{tpu_custom_call.1} parent=5 // pred_check_branch
        %150 = sbr.rel (%p147) target = $region12
      $region11: #{tpu_custom_call.1} parent=5 // pred_region
        %s151 = ssub.s32 %s18, 1
        // Predicated region
        $region13: #{tpu_custom_call.1} parent=11 // pred_check
          %p152 = pneg %p109
        $region14: #{tpu_custom_call.1} parent=11 // pred_check_branch
          %154 = sbr.rel (%p152) target = $region16
        $region15: #{tpu_custom_call.1} parent=11 // pred_region
          %s156 = ssub.s32 14336, 14336
          %157 = vsyncadd [#allocation6], %s156
          %s158 = sshll.u32 [#allocation7], 4
          %s159 = int_to_ptr.vmem [resolvable:$true] %s158
          %164 = dma.hbm_to_vmem [thread:$0]  %s2, 14336, %s159, [#allocation6], 64, 64, 4
        $region16: #{tpu_custom_call.1} parent=11 // pred_fallthru
          _
      $region12: #{tpu_custom_call.1} parent=5 // pred_fallthru
        _
      %p165 = scmp.lt.s32.totalorder %s18, 2
      // Predicated region
      $region17: #{tpu_custom_call.1} parent=5 // pred_check
        %p166 = pneg %p165
      $region18: #{tpu_custom_call.1} parent=5 // pred_check_branch
        %168 = sbr.rel (%p166) target = $region20
      $region19: #{tpu_custom_call.1} parent=5 // pred_region
        // Predicated region
        $region21: #{tpu_custom_call.1} parent=19 // pred_check
          %p169 = pneg %p52
        $region22: #{tpu_custom_call.1} parent=19 // pred_check_branch
          %171 = sbr.rel (%p169) target = $region24
        $region23: #{tpu_custom_call.1} parent=19 // pred_region
          %s172 = sand.u32 %s42, 1
          %s173 = scalar_lea.sflag [#allocation3], %s172
          %s174 = sand.u32 %s42, 1
          %s175 = smul.addr %s174, 16
          %s176 = scalar_lea.vmem [#allocation2], %s175
          %s177 = smul.u32 4, %s26
          %s179 = ssub.s32 256, 256
          %180 = vsyncadd %s173, %s179
          %s181 = smul.addr %s25, 8
          %s182 = sadd.s32 %s177, %s181
          %s183 = smul.addr %s182, 64
          %s184 = scalar_lea.hbm %s0, %s183
          %s185 = sshll.u32 %s176, 4
          %s186 = int_to_ptr.vmem [resolvable:$true] %s185
          %191 = dma.hbm_to_vmem [thread:$0]  %s184, 256, %s186, %s173, 64, 64, 4
        $region24: #{tpu_custom_call.1} parent=19 // pred_fallthru
          _
        // Predicated region
        $region25: #{tpu_custom_call.1} parent=19 // pred_check
          %p192 = pneg %p82
        $region26: #{tpu_custom_call.1} parent=19 // pred_check_branch
          %194 = sbr.rel (%p192) target = $region28
        $region27: #{tpu_custom_call.1} parent=19 // pred_region
          %s195 = sand.u32 %s18, 1
          %s196 = scalar_lea.sflag [#allocation6], %s195
          %s197 = sand.u32 %s72, 1
          %s198 = smul.addr %s197, 16
          %s199 = scalar_lea.vmem [#allocation5], %s198
          %s200 = sadd.s32 %s26, 1
          %s201 = smul.u32 4, %s200
          %s203 = ssub.s32 256, 256
          %204 = vsyncadd %s196, %s203
          %s205 = smul.addr %s25, 8
          %s206 = sadd.s32 %s201, %s205
          %s207 = smul.addr %s206, 64
          %s208 = scalar_lea.hbm %s1, %s207
          %s209 = sshll.u32 %s199, 4
          %s210 = int_to_ptr.vmem [resolvable:$true] %s209
          %215 = dma.hbm_to_vmem [thread:$0]  %s208, 256, %s210, %s196, 64, 64, 4
        $region28: #{tpu_custom_call.1} parent=19 // pred_fallthru
          _
      $region20: #{tpu_custom_call.1} parent=5 // pred_fallthru
        _
      %p216 = scmp.le.s32.totalorder 1, %s18
      %p217 = scmp.lt.s32.totalorder %s18, 3
      %p218 = pnand %p216, %p217
      %p219 = pneg %p218
      // Predicated region
      $region29: #{tpu_custom_call.1} parent=5 // pred_check
        _
      $region30: #{tpu_custom_call.1} parent=5 // pred_check_branch
        %221 = sbr.rel (%p218) target = $region32
      $region31: #{tpu_custom_call.1} parent=5 // pred_region
        %s222 = ssub.s32 %s18, 1
        %s223 = sand.u32 %s45, 1
        %s224 = scalar_lea.sflag [#allocation3], %s223
        %s225 = sand.u32 %s45, 1
        %s226 = smul.addr %s225, 16
        %s227 = scalar_lea.vmem [#allocation2], %s226
        // Predicated region
        $region33: #{tpu_custom_call.1} parent=31 // pred_check
          %p228 = pneg %p58
        $region34: #{tpu_custom_call.1} parent=31 // pred_check_branch
          %230 = sbr.rel (%p228) target = $region36
        $region35: #{tpu_custom_call.1} parent=31 // pred_region
          %231 = dma.done %s224, 256
        $region36: #{tpu_custom_call.1} parent=31 // pred_fallthru
          _
        %s232 = sand.u32 %s23, 1
        %s233 = scalar_lea.sflag [#allocation6], %s232
        %s234 = sand.u32 %s75, 1
        %s235 = smul.addr %s234, 16
        %s236 = scalar_lea.vmem [#allocation5], %s235
        // Predicated region
        $region37: #{tpu_custom_call.1} parent=31 // pred_check
          %p237 = pneg %p88
        $region38: #{tpu_custom_call.1} parent=31 // pred_check_branch
          %239 = sbr.rel (%p237) target = $region40
        $region39: #{tpu_custom_call.1} parent=31 // pred_region
          %240 = dma.done %s233, 256
        $region40: #{tpu_custom_call.1} parent=31 // pred_fallthru
          _
        // Predicated region
        $region41: #{tpu_custom_call.1} parent=31 // pred_check
          %p241 = pneg %p109
        $region42: #{tpu_custom_call.1} parent=31 // pred_check_branch
          %243 = sbr.rel (%p241) target = $region44
        $region43: #{tpu_custom_call.1} parent=31 // pred_region
          %244 = dma.done [#allocation6], 14336
        $region44: #{tpu_custom_call.1} parent=31 // pred_fallthru
          _
        %s245 = sand.u32 %s45, 1
        %s246 = scalar_lea.sflag [#allocation3], %s245
        %s247 = sand.u32 %s45, 1
        %s248 = smul.addr %s247, 16
        %s249 = scalar_lea.vmem [#allocation2], %s248
        %p250 = pneg %p58
        %p251 = pneg %p55
        %s252 = sand.u32 %s23, 1
        %s253 = scalar_lea.sflag [#allocation6], %s252
        %s254 = sand.u32 %s75, 1
        %s255 = smul.addr %s254, 16
        %s256 = scalar_lea.vmem [#allocation5], %s255
        %p257 = pneg %p88
        %p258 = pneg %p85
        %p259 = pneg %p109
        %p260 = pneg %p106
        %p261 = pneg %p137
        %p262 = pneg %p134
        %s263 = sand.u32 %s124, 1
        %s264 = scalar_lea.sflag [#allocation4], %s263
        %s265 = sand.u32 %s124, 1
        %s266 = smul.addr %s265, 32
        %s267 = scalar_lea.vmem [#allocation8], %s266
        %s268 = smul.u32 4, %s28
        %s269 = sadd.s32 %s28, 1
        %s270 = smul.u32 4, %s269
        %s271 = smul.u32 4, %s28
        %v273 = vld [vmem:[%s227] sm:$0xf]
        %v274 = vld [vmem:[%s227 + $0x4] sm:$0xf]
        %v275 = vld [vmem:[%s227 + $0x8] sm:$0xf]
        %v276 = vld [vmem:[%s227 + $0xc] sm:$0xf]
        %v277 = vld [vmem:[%s236] sm:$0xf]
        %v278 = vld [vmem:[%s236 + $0x4] sm:$0xf]
        %v279 = vld [vmem:[%s236 + $0x8] sm:$0xf]
        %v280 = vld [vmem:[%s236 + $0xc] sm:$0xf]
        %v285 = vunpack.c.l.b16 %v273
        %v286 = vunpack.c.l.b16 %v274
        %v287 = vunpack.c.l.b16 %v275
        %v288 = vunpack.c.l.b16 %v276
        %v289 = vpack.c.b16 %v286, %v285
        %v290 = vpack.c.b16 %v288, %v287
        %v295 = vunpack.c.l.b16 %v277
        %v296 = vunpack.c.l.b16 %v278
        %v297 = vunpack.c.l.b16 %v279
        %v298 = vunpack.c.l.b16 %v280
        %v299 = vpack.c.b16 %v296, %v295
        %v300 = vpack.c.b16 %v298, %v297
        %vm301 = vsmask.f32 7424
        %v303 = vshrl.u32 %v289, 16
        %v305 = vshll.u32 %v289, 16
        %v307 = vrot.slane %v305, 1
        %v308 = vor.u32 %v303, %v307
        %v310 = vshll.u32 %v290, 16
        %v312 = vrot.slane %v310, 1
        %v313 = vsel %vm301, %v308, %v312
        %v314 = vshrl.u32 %v290, 16
        %v316 = vor.u32 %v314, %v312
        %v318 = vshll.u32 %v299, 16
        %v320 = vrot.slane %v318, 1
        %v321 = vsel %vm301, %v316, %v320
        %322 = vrot.lane.b32.xlu0 %v313, 64
        %v323 = vpop.permute.xlu0 %322
        %324 = vrot.lane.b32.xlu0 %v321, 64
        %v325 = vpop.permute.xlu0 %324
        %vm326 = vcmask 1046528
        %v327 = vrot.slane %v289, 1
        %v328 = vrot.slane %v290, 1
        %v329 = vsel %vm326, %v327, %v328
        %v330 = vrot.slane %v299, 1
        %v331 = vsel %vm326, %v328, %v330
        %vm332 = vsmask.f32 6400
        %v333 = vrot.slane %v303, 1
        %v334 = vrot.slane %v305, 2
        %v335 = vor.u32 %v333, %v334
        %v336 = vrot.slane %v314, 1
        %v337 = vrot.slane %v310, 2
        %v338 = vor.u32 %v336, %v337
        %v339 = vsel %vm332, %v335, %v338
        %v340 = vshrl.u32 %v299, 16
        %v342 = vrot.slane %v340, 1
        %v343 = vrot.slane %v318, 2
        %v344 = vor.u32 %v342, %v343
        %v345 = vsel %vm332, %v338, %v344
        %346 = vrot.lane.b32.xlu0 %v339, 64
        %v347 = vpop.permute.xlu0 %346
        %348 = vrot.lane.b32.xlu0 %v345, 64
        %v349 = vpop.permute.xlu0 %348
        %vm350 = vcmask 1045504
        %v351 = vrot.slane %v289, 2
        %v352 = vrot.slane %v290, 2
        %v353 = vsel %vm350, %v351, %v352
        %v354 = vrot.slane %v299, 2
        %v355 = vsel %vm350, %v352, %v354
        %vm356 = vsmask.f32 5376
        %v357 = vrot.slane %v303, 2
        %v358 = vrot.slane %v305, 3
        %v359 = vor.u32 %v357, %v358
        %v360 = vrot.slane %v314, 2
        %v361 = vrot.slane %v310, 3
        %v362 = vor.u32 %v360, %v361
        %v363 = vsel %vm356, %v359, %v362
        %v364 = vrot.slane %v340, 2
        %v365 = vrot.slane %v318, 3
        %v366 = vor.u32 %v364, %v365
        %v367 = vsel %vm356, %v362, %v366
        %368 = vrot.lane.b32.xlu0 %v363, 64
        %v369 = vpop.permute.xlu0 %368
        %370 = vrot.lane.b32.xlu0 %v367, 64
        %v371 = vpop.permute.xlu0 %370
        %vm372 = vcmask 1044480
        %v373 = vrot.slane %v289, 3
        %v374 = vrot.slane %v290, 3
        %v375 = vsel %vm372, %v373, %v374
        %v376 = vrot.slane %v299, 3
        %v377 = vsel %vm372, %v374, %v376
        %vm378 = vsmask.f32 4352
        %v379 = vrot.slane %v303, 3
        %v380 = vrot.slane %v305, 4
        %v381 = vor.u32 %v379, %v380
        %v382 = vrot.slane %v314, 3
        %v383 = vrot.slane %v310, 4
        %v384 = vor.u32 %v382, %v383
        %v385 = vsel %vm378, %v381, %v384
        %v386 = vrot.slane %v340, 3
        %v387 = vrot.slane %v318, 4
        %v388 = vor.u32 %v386, %v387
        %v389 = vsel %vm378, %v384, %v388
        %390 = vrot.lane.b32.xlu0 %v385, 64
        %v391 = vpop.permute.xlu0 %390
        %392 = vrot.lane.b32.xlu0 %v389, 64
        %v393 = vpop.permute.xlu0 %392
        %vm394 = vcmask 1043456
        %v395 = vrot.slane %v289, 4
        %v396 = vrot.slane %v290, 4
        %v397 = vsel %vm394, %v395, %v396
        %v398 = vrot.slane %v299, 4
        %v399 = vsel %vm394, %v396, %v398
        %vm400 = vsmask.f32 3328
        %v401 = vrot.slane %v303, 4
        %v402 = vrot.slane %v305, 5
        %v403 = vor.u32 %v401, %v402
        %v404 = vrot.slane %v314, 4
        %v405 = vrot.slane %v310, 5
        %v406 = vor.u32 %v404, %v405
        %v407 = vsel %vm400, %v403, %v406
        %v408 = vrot.slane %v340, 4
        %v409 = vrot.slane %v318, 5
        %v410 = vor.u32 %v408, %v409
        %v411 = vsel %vm400, %v406, %v410
        %412 = vrot.lane.b32.xlu0 %v407, 64
        %v413 = vpop.permute.xlu0 %412
        %414 = vrot.lane.b32.xlu0 %v411, 64
        %v415 = vpop.permute.xlu0 %414
        %vm416 = vcmask 1042432
        %v417 = vrot.slane %v289, 5
        %v418 = vrot.slane %v290, 5
        %v419 = vsel %vm416, %v417, %v418
        %v420 = vrot.slane %v299, 5
        %v421 = vsel %vm416, %v418, %v420
        %vm422 = vsmask.f32 2304
        %v423 = vrot.slane %v303, 5
        %v424 = vrot.slane %v305, 6
        %v425 = vor.u32 %v423, %v424
        %v426 = vrot.slane %v314, 5
        %v427 = vrot.slane %v310, 6
        %v428 = vor.u32 %v426, %v427
        %v429 = vsel %vm422, %v425, %v428
        %v430 = vrot.slane %v340, 5
        %v431 = vrot.slane %v318, 6
        %v432 = vor.u32 %v430, %v431
        %v433 = vsel %vm422, %v428, %v432
        %434 = vrot.lane.b32.xlu0 %v429, 64
        %v435 = vpop.permute.xlu0 %434
        %436 = vrot.lane.b32.xlu0 %v433, 64
        %v437 = vpop.permute.xlu0 %436
        %vm438 = vcmask 1041408
        %v439 = vrot.slane %v289, 6
        %v440 = vrot.slane %v290, 6
        %v441 = vsel %vm438, %v439, %v440
        %v442 = vrot.slane %v299, 6
        %v443 = vsel %vm438, %v440, %v442
        %vm444 = vsmask.f32 1280
        %v445 = vrot.slane %v303, 6
        %v446 = vrot.slane %v305, 7
        %v447 = vor.u32 %v445, %v446
        %v448 = vrot.slane %v314, 6
        %v449 = vrot.slane %v310, 7
        %v450 = vor.u32 %v448, %v449
        %v451 = vsel %vm444, %v447, %v450
        %v452 = vrot.slane %v340, 6
        %v453 = vrot.slane %v318, 7
        %v454 = vor.u32 %v452, %v453
        %v455 = vsel %vm444, %v450, %v454
        %456 = vrot.lane.b32.xlu0 %v451, 64
        %v457 = vpop.permute.xlu0 %456
        %458 = vrot.lane.b32.xlu0 %v455, 64
        %v459 = vpop.permute.xlu0 %458
        %vm460 = vcmask 1040384
        %v461 = vrot.slane %v289, 7
        %v462 = vrot.slane %v290, 7
        %v463 = vsel %vm460, %v461, %v462
        %v464 = vrot.slane %v299, 7
        %v465 = vsel %vm460, %v462, %v464
        %vm466 = vsmask.f32 256
        %v467 = vrot.slane %v303, 7
        %v468 = vrot.slane %v314, 7
        %v469 = vor.u32 %v468, %v310
        %v470 = vsel %vm466, %v467, %v469
        %v471 = vrot.slane %v340, 7
        %v472 = vor.u32 %v471, %v318
        %v473 = vsel %vm466, %v468, %v472
        %474 = vrot.lane.b32.xlu0 %v470, 64
        %v475 = vpop.permute.xlu0 %474
        %476 = vrot.lane.b32.xlu0 %v473, 64
        %v477 = vpop.permute.xlu0 %476
        %vm478 = vcmask 523264
        %v480 = vsel %vm478, %v289, %v323
        %v483 = vsel %vm478, %v290, %v325
        %v487 = vsel %vm478, %v329, %v347
        %v491 = vsel %vm478, %v331, %v349
        %v495 = vsel %vm478, %v353, %v369
        %v499 = vsel %vm478, %v355, %v371
        %v503 = vsel %vm478, %v375, %v391
        %v507 = vsel %vm478, %v377, %v393
        %v511 = vsel %vm478, %v397, %v413
        %v515 = vsel %vm478, %v399, %v415
        %v519 = vsel %vm478, %v419, %v435
        %v523 = vsel %vm478, %v421, %v437
        %v527 = vsel %vm478, %v441, %v457
        %v531 = vsel %vm478, %v443, %v459
        %v535 = vsel %vm478, %v463, %v475
        %v539 = vsel %vm478, %v465, %v477
        %v541 = vor.u32 %v340, %v320
        %v543 = vshll.u32 %v300, 16
        %v545 = vrot.slane %v543, 1
        %v546 = vsel %vm301, %v541, %v545
        %547 = vrot.lane.b32.xlu0 %v546, 64
        %v548 = vpop.permute.xlu0 %547
        %v549 = vrot.slane %v300, 1
        %v550 = vsel %vm326, %v330, %v549
        %v551 = vshrl.u32 %v300, 16
        %v553 = vrot.slane %v551, 1
        %v554 = vrot.slane %v543, 2
        %v555 = vor.u32 %v553, %v554
        %v556 = vsel %vm332, %v344, %v555
        %557 = vrot.lane.b32.xlu0 %v556, 64
        %v558 = vpop.permute.xlu0 %557
        %v559 = vrot.slane %v300, 2
        %v560 = vsel %vm350, %v354, %v559
        %v561 = vrot.slane %v551, 2
        %v562 = vrot.slane %v543, 3
        %v563 = vor.u32 %v561, %v562
        %v564 = vsel %vm356, %v366, %v563
        %565 = vrot.lane.b32.xlu0 %v564, 64
        %v566 = vpop.permute.xlu0 %565
        %v567 = vrot.slane %v300, 3
        %v568 = vsel %vm372, %v376, %v567
        %v569 = vrot.slane %v551, 3
        %v570 = vrot.slane %v543, 4
        %v571 = vor.u32 %v569, %v570
        %v572 = vsel %vm378, %v388, %v571
        %573 = vrot.lane.b32.xlu0 %v572, 64
        %v574 = vpop.permute.xlu0 %573
        %v575 = vrot.slane %v300, 4
        %v576 = vsel %vm394, %v398, %v575
        %v577 = vrot.slane %v551, 4
        %v578 = vrot.slane %v543, 5
        %v579 = vor.u32 %v577, %v578
        %v580 = vsel %vm400, %v410, %v579
        %581 = vrot.lane.b32.xlu0 %v580, 64
        %v582 = vpop.permute.xlu0 %581
        %v583 = vrot.slane %v300, 5
        %v584 = vsel %vm416, %v420, %v583
        %v586 = vsel %vm478, %v299, %v548
        %v590 = vsel %vm478, %v550, %v558
        %v594 = vsel %vm478, %v560, %v566
        %v598 = vsel %vm478, %v568, %v574
        %v602 = vsel %vm478, %v576, %v582
        %v605 = vsel %vm478, %v421, 0
        %v608 = vsel %vm478, %v584, 0
        %v610 = vld [vmem:[#allocation7] sm:$0xf]
        %v611 = vld [vmem:[#allocation7 + $0x4] sm:$0xf]
        %v612 = vld [vmem:[#allocation7 + $0x8] sm:$0xf]
        %v613 = vld [vmem:[#allocation7 + $0xc] sm:$0xf]
        %v614 = vld [vmem:[#allocation7 + $0x10] sm:$0xf]
        %v615 = vld [vmem:[#allocation7 + $0x14] sm:$0xf]
        %v616 = vld [vmem:[#allocation7 + $0x18] sm:$0xf]
        %v617 = vld [vmem:[#allocation7 + $0x1c] sm:$0xf]
        %v618 = vld [vmem:[#allocation7 + $0x20] sm:$0xf]
        %v619 = vld [vmem:[#allocation7 + $0x24] sm:$0xf]
        %v620 = vld [vmem:[#allocation7 + $0x28] sm:$0xf]
        %v621 = vld [vmem:[#allocation7 + $0x2c] sm:$0xf]
        %v622 = vld [vmem:[#allocation7 + $0x30] sm:$0xf]
        %v623 = vld [vmem:[#allocation7 + $0x34] sm:$0xf]
        %v624 = vld [vmem:[#allocation7 + $0x38] sm:$0xf]
        %v625 = vld [vmem:[#allocation7 + $0x3c] sm:$0xf]
        %v626 = vld [vmem:[#allocation7 + $0x40] sm:$0xf]
        %v627 = vld [vmem:[#allocation7 + $0x44] sm:$0xf]
        %v628 = vld [vmem:[#allocation7 + $0x48] sm:$0xf]
        %v629 = vld [vmem:[#allocation7 + $0x4c] sm:$0xf]
        %v630 = vld [vmem:[#allocation7 + $0x50] sm:$0xf]
        %v631 = vld [vmem:[#allocation7 + $0x54] sm:$0xf]
        %v632 = vld [vmem:[#allocation7 + $0x58] sm:$0xf]
        %v633 = vld [vmem:[#allocation7 + $0x5c] sm:$0xf]
        %v634 = vld [vmem:[#allocation7 + $0x60] sm:$0xf]
        %v635 = vld [vmem:[#allocation7 + $0x64] sm:$0xf]
        %v636 = vld [vmem:[#allocation7 + $0x68] sm:$0xf]
        %v637 = vld [vmem:[#allocation7 + $0x6c] sm:$0xf]
        %v638 = vld [vmem:[#allocation7 + $0x70] sm:$0xf]
        %v639 = vld [vmem:[#allocation7 + $0x74] sm:$0xf]
        %v640 = vld [vmem:[#allocation7 + $0x78] sm:$0xf]
        %v641 = vld [vmem:[#allocation7 + $0x7c] sm:$0xf]
        %v642 = vld [vmem:[#allocation7 + $0x80] sm:$0xf]
        %v643 = vld [vmem:[#allocation7 + $0x84] sm:$0xf]
        %v644 = vld [vmem:[#allocation7 + $0x88] sm:$0xf]
        %v645 = vld [vmem:[#allocation7 + $0x8c] sm:$0xf]
        %v646 = vld [vmem:[#allocation7 + $0x90] sm:$0xf]
        %v647 = vld [vmem:[#allocation7 + $0x94] sm:$0xf]
        %v648 = vld [vmem:[#allocation7 + $0x98] sm:$0xf]
        %v649 = vld [vmem:[#allocation7 + $0x9c] sm:$0xf]
        %v650 = vld [vmem:[#allocation7 + $0xa0] sm:$0xf]
        %v651 = vld [vmem:[#allocation7 + $0xa4] sm:$0xf]
        %v652 = vld [vmem:[#allocation7 + $0xa8] sm:$0xf]
        %v653 = vld [vmem:[#allocation7 + $0xac] sm:$0xf]
        %v654 = vld [vmem:[#allocation7 + $0xb0] sm:$0xf]
        %v655 = vld [vmem:[#allocation7 + $0xb4] sm:$0xf]
        %v656 = vld [vmem:[#allocation7 + $0xb8] sm:$0xf]
        %v657 = vld [vmem:[#allocation7 + $0xbc] sm:$0xf]
        %v658 = vld [vmem:[#allocation7 + $0xc0] sm:$0xf]
        %v659 = vld [vmem:[#allocation7 + $0xc4] sm:$0xf]
        %v660 = vld [vmem:[#allocation7 + $0xc8] sm:$0xf]
        %v661 = vld [vmem:[#allocation7 + $0xcc] sm:$0xf]
        %v662 = vld [vmem:[#allocation7 + $0xd0] sm:$0xf]
        %v663 = vld [vmem:[#allocation7 + $0xd4] sm:$0xf]
        %v664 = vld [vmem:[#allocation7 + $0xd8] sm:$0xf]
        %v665 = vld [vmem:[#allocation7 + $0xdc] sm:$0xf]
        %v666 = vld [vmem:[#allocation7 + $0xe0] sm:$0xf]
        %v667 = vld [vmem:[#allocation7 + $0xe4] sm:$0xf]
        %v668 = vld [vmem:[#allocation7 + $0xe8] sm:$0xf]
        %v669 = vld [vmem:[#allocation7 + $0xec] sm:$0xf]
        %v670 = vld [vmem:[#allocation7 + $0xf0] sm:$0xf]
        %v671 = vld [vmem:[#allocation7 + $0xf4] sm:$0xf]
        %v672 = vld [vmem:[#allocation7 + $0xf8] sm:$0xf]
        %v673 = vld [vmem:[#allocation7 + $0xfc] sm:$0xf]
        %v674 = vld [vmem:[#allocation7 + $0x100] sm:$0xf]
        %v675 = vld [vmem:[#allocation7 + $0x104] sm:$0xf]
        %v676 = vld [vmem:[#allocation7 + $0x108] sm:$0xf]
        %v677 = vld [vmem:[#allocation7 + $0x10c] sm:$0xf]
        %v678 = vld [vmem:[#allocation7 + $0x110] sm:$0xf]
        %v679 = vld [vmem:[#allocation7 + $0x114] sm:$0xf]
        %v680 = vld [vmem:[#allocation7 + $0x118] sm:$0xf]
        %v681 = vld [vmem:[#allocation7 + $0x11c] sm:$0xf]
        %v682 = vld [vmem:[#allocation7 + $0x120] sm:$0xf]
        %v683 = vld [vmem:[#allocation7 + $0x124] sm:$0xf]
        %v684 = vld [vmem:[#allocation7 + $0x128] sm:$0xf]
        %v685 = vld [vmem:[#allocation7 + $0x12c] sm:$0xf]
        %v686 = vld [vmem:[#allocation7 + $0x130] sm:$0xf]
        %v687 = vld [vmem:[#allocation7 + $0x134] sm:$0xf]
        %v688 = vld [vmem:[#allocation7 + $0x138] sm:$0xf]
        %v689 = vld [vmem:[#allocation7 + $0x13c] sm:$0xf]
        %v690 = vld [vmem:[#allocation7 + $0x140] sm:$0xf]
        %v691 = vld [vmem:[#allocation7 + $0x144] sm:$0xf]
        %v692 = vld [vmem:[#allocation7 + $0x148] sm:$0xf]
        %v693 = vld [vmem:[#allocation7 + $0x14c] sm:$0xf]
        %v694 = vld [vmem:[#allocation7 + $0x150] sm:$0xf]
        %v695 = vld [vmem:[#allocation7 + $0x154] sm:$0xf]
        %v696 = vld [vmem:[#allocation7 + $0x158] sm:$0xf]
        %v697 = vld [vmem:[#allocation7 + $0x15c] sm:$0xf]
        %v698 = vld [vmem:[#allocation7 + $0x160] sm:$0xf]
        %v699 = vld [vmem:[#allocation7 + $0x164] sm:$0xf]
        %v700 = vld [vmem:[#allocation7 + $0x168] sm:$0xf]
        %v701 = vld [vmem:[#allocation7 + $0x16c] sm:$0xf]
        %v702 = vld [vmem:[#allocation7 + $0x170] sm:$0xf]
        %v703 = vld [vmem:[#allocation7 + $0x174] sm:$0xf]
        %v704 = vld [vmem:[#allocation7 + $0x178] sm:$0xf]
        %v705 = vld [vmem:[#allocation7 + $0x17c] sm:$0xf]
        %v706 = vld [vmem:[#allocation7 + $0x180] sm:$0xf]
        %v707 = vld [vmem:[#allocation7 + $0x184] sm:$0xf]
        %v708 = vld [vmem:[#allocation7 + $0x188] sm:$0xf]
        %v709 = vld [vmem:[#allocation7 + $0x18c] sm:$0xf]
        %v710 = vld [vmem:[#allocation7 + $0x190] sm:$0xf]
        %v711 = vld [vmem:[#allocation7 + $0x194] sm:$0xf]
        %v712 = vld [vmem:[#allocation7 + $0x198] sm:$0xf]
        %v713 = vld [vmem:[#allocation7 + $0x19c] sm:$0xf]
        %v714 = vld [vmem:[#allocation7 + $0x1a0] sm:$0xf]
        %v715 = vld [vmem:[#allocation7 + $0x1a4] sm:$0xf]
        %v716 = vld [vmem:[#allocation7 + $0x1a8] sm:$0xf]
        %v717 = vld [vmem:[#allocation7 + $0x1ac] sm:$0xf]
        %v718 = vld [vmem:[#allocation7 + $0x1b0] sm:$0xf]
        %v719 = vld [vmem:[#allocation7 + $0x1b4] sm:$0xf]
        %v720 = vld [vmem:[#allocation7 + $0x1b8] sm:$0xf]
        %v721 = vld [vmem:[#allocation7 + $0x1bc] sm:$0xf]
        %v722 = vld [vmem:[#allocation7 + $0x1c0] sm:$0xf]
        %v723 = vld [vmem:[#allocation7 + $0x1c4] sm:$0xf]
        %v724 = vld [vmem:[#allocation7 + $0x1c8] sm:$0xf]
        %v725 = vld [vmem:[#allocation7 + $0x1cc] sm:$0xf]
        %v726 = vld [vmem:[#allocation7 + $0x1d0] sm:$0xf]
        %v727 = vld [vmem:[#allocation7 + $0x1d4] sm:$0xf]
        %v728 = vld [vmem:[#allocation7 + $0x1d8] sm:$0xf]
        %v729 = vld [vmem:[#allocation7 + $0x1dc] sm:$0xf]
        %v730 = vld [vmem:[#allocation7 + $0x1e0] sm:$0xf]
        %v731 = vld [vmem:[#allocation7 + $0x1e4] sm:$0xf]
        %v732 = vld [vmem:[#allocation7 + $0x1e8] sm:$0xf]
        %v733 = vld [vmem:[#allocation7 + $0x1ec] sm:$0xf]
        %v734 = vld [vmem:[#allocation7 + $0x1f0] sm:$0xf]
        %v735 = vld [vmem:[#allocation7 + $0x1f4] sm:$0xf]
        %v736 = vld [vmem:[#allocation7 + $0x1f8] sm:$0xf]
        %v737 = vld [vmem:[#allocation7 + $0x1fc] sm:$0xf]
        %v738 = vld [vmem:[#allocation7 + $0x200] sm:$0xf]
        %v739 = vld [vmem:[#allocation7 + $0x204] sm:$0xf]
        %v740 = vld [vmem:[#allocation7 + $0x208] sm:$0xf]
        %v741 = vld [vmem:[#allocation7 + $0x20c] sm:$0xf]
        %v742 = vld [vmem:[#allocation7 + $0x210] sm:$0xf]
        %v743 = vld [vmem:[#allocation7 + $0x214] sm:$0xf]
        %v744 = vld [vmem:[#allocation7 + $0x218] sm:$0xf]
        %v745 = vld [vmem:[#allocation7 + $0x21c] sm:$0xf]
        %v746 = vld [vmem:[#allocation7 + $0x220] sm:$0xf]
        %v747 = vld [vmem:[#allocation7 + $0x224] sm:$0xf]
        %v748 = vld [vmem:[#allocation7 + $0x228] sm:$0xf]
        %v749 = vld [vmem:[#allocation7 + $0x22c] sm:$0xf]
        %v750 = vld [vmem:[#allocation7 + $0x230] sm:$0xf]
        %v751 = vld [vmem:[#allocation7 + $0x234] sm:$0xf]
        %v752 = vld [vmem:[#allocation7 + $0x238] sm:$0xf]
        %v753 = vld [vmem:[#allocation7 + $0x23c] sm:$0xf]
        %v754 = vld [vmem:[#allocation7 + $0x240] sm:$0xf]
        %v755 = vld [vmem:[#allocation7 + $0x244] sm:$0xf]
        %v756 = vld [vmem:[#allocation7 + $0x248] sm:$0xf]
        %v757 = vld [vmem:[#allocation7 + $0x24c] sm:$0xf]
        %v758 = vld [vmem:[#allocation7 + $0x250] sm:$0xf]
        %v759 = vld [vmem:[#allocation7 + $0x254] sm:$0xf]
        %v760 = vld [vmem:[#allocation7 + $0x258] sm:$0xf]
        %v761 = vld [vmem:[#allocation7 + $0x25c] sm:$0xf]
        %v762 = vld [vmem:[#allocation7 + $0x260] sm:$0xf]
        %v763 = vld [vmem:[#allocation7 + $0x264] sm:$0xf]
        %v764 = vld [vmem:[#allocation7 + $0x268] sm:$0xf]
        %v765 = vld [vmem:[#allocation7 + $0x26c] sm:$0xf]
        %v766 = vld [vmem:[#allocation7 + $0x270] sm:$0xf]
        %v767 = vld [vmem:[#allocation7 + $0x274] sm:$0xf]
        %v768 = vld [vmem:[#allocation7 + $0x278] sm:$0xf]
        %v769 = vld [vmem:[#allocation7 + $0x27c] sm:$0xf]
        %v770 = vld [vmem:[#allocation7 + $0x280] sm:$0xf]
        %v771 = vld [vmem:[#allocation7 + $0x284] sm:$0xf]
        %v772 = vld [vmem:[#allocation7 + $0x288] sm:$0xf]
        %v773 = vld [vmem:[#allocation7 + $0x28c] sm:$0xf]
        %v774 = vld [vmem:[#allocation7 + $0x290] sm:$0xf]
        %v775 = vld [vmem:[#allocation7 + $0x294] sm:$0xf]
        %v776 = vld [vmem:[#allocation7 + $0x298] sm:$0xf]
        %v777 = vld [vmem:[#allocation7 + $0x29c] sm:$0xf]
        %v778 = vld [vmem:[#allocation7 + $0x2a0] sm:$0xf]
        %v779 = vld [vmem:[#allocation7 + $0x2a4] sm:$0xf]
        %v780 = vld [vmem:[#allocation7 + $0x2a8] sm:$0xf]
        %v781 = vld [vmem:[#allocation7 + $0x2ac] sm:$0xf]
        %v782 = vld [vmem:[#allocation7 + $0x2b0] sm:$0xf]
        %v783 = vld [vmem:[#allocation7 + $0x2b4] sm:$0xf]
        %v784 = vld [vmem:[#allocation7 + $0x2b8] sm:$0xf]
        %v785 = vld [vmem:[#allocation7 + $0x2bc] sm:$0xf]
        %v786 = vld [vmem:[#allocation7 + $0x2c0] sm:$0xf]
        %v787 = vld [vmem:[#allocation7 + $0x2c4] sm:$0xf]
        %v788 = vld [vmem:[#allocation7 + $0x2c8] sm:$0xf]
        %v789 = vld [vmem:[#allocation7 + $0x2cc] sm:$0xf]
        %v790 = vld [vmem:[#allocation7 + $0x2d0] sm:$0xf]
        %v791 = vld [vmem:[#allocation7 + $0x2d4] sm:$0xf]
        %v792 = vld [vmem:[#allocation7 + $0x2d8] sm:$0xf]
        %v793 = vld [vmem:[#allocation7 + $0x2dc] sm:$0xf]
        %v794 = vld [vmem:[#allocation7 + $0x2e0] sm:$0xf]
        %v795 = vld [vmem:[#allocation7 + $0x2e4] sm:$0xf]
        %v796 = vld [vmem:[#allocation7 + $0x2e8] sm:$0xf]
        %v797 = vld [vmem:[#allocation7 + $0x2ec] sm:$0xf]
        %v798 = vld [vmem:[#allocation7 + $0x2f0] sm:$0xf]
        %v799 = vld [vmem:[#allocation7 + $0x2f4] sm:$0xf]
        %v800 = vld [vmem:[#allocation7 + $0x2f8] sm:$0xf]
        %v801 = vld [vmem:[#allocation7 + $0x2fc] sm:$0xf]
        %v802 = vld [vmem:[#allocation7 + $0x300] sm:$0xf]
        %v803 = vld [vmem:[#allocation7 + $0x304] sm:$0xf]
        %v804 = vld [vmem:[#allocation7 + $0x308] sm:$0xf]
        %v805 = vld [vmem:[#allocation7 + $0x30c] sm:$0xf]
        %v806 = vld [vmem:[#allocation7 + $0x310] sm:$0xf]
        %v807 = vld [vmem:[#allocation7 + $0x314] sm:$0xf]
        %v808 = vld [vmem:[#allocation7 + $0x318] sm:$0xf]
        %v809 = vld [vmem:[#allocation7 + $0x31c] sm:$0xf]
        %v810 = vld [vmem:[#allocation7 + $0x320] sm:$0xf]
        %v811 = vld [vmem:[#allocation7 + $0x324] sm:$0xf]
        %v812 = vld [vmem:[#allocation7 + $0x328] sm:$0xf]
        %v813 = vld [vmem:[#allocation7 + $0x32c] sm:$0xf]
        %v814 = vld [vmem:[#allocation7 + $0x330] sm:$0xf]
        %v815 = vld [vmem:[#allocation7 + $0x334] sm:$0xf]
        %v816 = vld [vmem:[#allocation7 + $0x338] sm:$0xf]
        %v817 = vld [vmem:[#allocation7 + $0x33c] sm:$0xf]
        %v818 = vld [vmem:[#allocation7 + $0x340] sm:$0xf]
        %v819 = vld [vmem:[#allocation7 + $0x344] sm:$0xf]
        %v820 = vld [vmem:[#allocation7 + $0x348] sm:$0xf]
        %v821 = vld [vmem:[#allocation7 + $0x34c] sm:$0xf]
        %v822 = vld [vmem:[#allocation7 + $0x350] sm:$0xf]
        %v823 = vld [vmem:[#allocation7 + $0x354] sm:$0xf]
        %v824 = vld [vmem:[#allocation7 + $0x358] sm:$0xf]
        %v825 = vld [vmem:[#allocation7 + $0x35c] sm:$0xf]
        %v826 = vld [vmem:[#allocation7 + $0x360] sm:$0xf]
        %v827 = vld [vmem:[#allocation7 + $0x364] sm:$0xf]
        %v828 = vld [vmem:[#allocation7 + $0x368] sm:$0xf]
        %v829 = vld [vmem:[#allocation7 + $0x36c] sm:$0xf]
        %v830 = vld [vmem:[#allocation7 + $0x370] sm:$0xf]
        %v831 = vld [vmem:[#allocation7 + $0x374] sm:$0xf]
        %v832 = vld [vmem:[#allocation7 + $0x378] sm:$0xf]
        %v833 = vld [vmem:[#allocation7 + $0x37c] sm:$0xf]
        %v1058 = vunpack.c.l.b16 %v610
        %v1059 = vunpack.c.l.b16 %v611
        %v1060 = vunpack.c.l.b16 %v612
        %v1061 = vunpack.c.l.b16 %v613
        %v1062 = vunpack.c.l.b16 %v614
        %v1063 = vunpack.c.l.b16 %v615
        %v1064 = vunpack.c.l.b16 %v616
        %v1065 = vunpack.c.l.b16 %v617
        %v1066 = vunpack.c.l.b16 %v618
        %v1067 = vunpack.c.l.b16 %v619
        %v1068 = vunpack.c.l.b16 %v620
        %v1069 = vunpack.c.l.b16 %v621
        %v1070 = vunpack.c.l.b16 %v622
        %v1071 = vunpack.c.l.b16 %v623
        %v1072 = vunpack.c.l.b16 %v624
        %v1073 = vunpack.c.l.b16 %v625
        %v1074 = vunpack.c.l.b16 %v626
        %v1075 = vunpack.c.l.b16 %v627
        %v1076 = vunpack.c.l.b16 %v628
        %v1077 = vunpack.c.l.b16 %v629
        %v1078 = vunpack.c.l.b16 %v630
        %v1079 = vunpack.c.l.b16 %v631
        %v1080 = vunpack.c.l.b16 %v632
        %v1081 = vunpack.c.l.b16 %v633
        %v1082 = vunpack.c.l.b16 %v634
        %v1083 = vunpack.c.l.b16 %v635
        %v1084 = vunpack.c.l.b16 %v636
        %v1085 = vunpack.c.l.b16 %v637
        %v1086 = vunpack.c.l.b16 %v638
        %v1087 = vunpack.c.l.b16 %v639
        %v1088 = vunpack.c.l.b16 %v640
        %v1089 = vunpack.c.l.b16 %v641
        %v1090 = vunpack.c.l.b16 %v642
        %v1091 = vunpack.c.l.b16 %v643
        %v1092 = vunpack.c.l.b16 %v644
        %v1093 = vunpack.c.l.b16 %v645
        %v1094 = vunpack.c.l.b16 %v646
        %v1095 = vunpack.c.l.b16 %v647
        %v1096 = vunpack.c.l.b16 %v648
        %v1097 = vunpack.c.l.b16 %v649
        %v1098 = vunpack.c.l.b16 %v650
        %v1099 = vunpack.c.l.b16 %v651
        %v1100 = vunpack.c.l.b16 %v652
        %v1101 = vunpack.c.l.b16 %v653
        %v1102 = vunpack.c.l.b16 %v654
        %v1103 = vunpack.c.l.b16 %v655
        %v1104 = vunpack.c.l.b16 %v656
        %v1105 = vunpack.c.l.b16 %v657
        %v1106 = vunpack.c.l.b16 %v658
        %v1107 = vunpack.c.l.b16 %v659
        %v1108 = vunpack.c.l.b16 %v660
        %v1109 = vunpack.c.l.b16 %v661
        %v1110 = vunpack.c.l.b16 %v662
        %v1111 = vunpack.c.l.b16 %v663
        %v1112 = vunpack.c.l.b16 %v664
        %v1113 = vunpack.c.l.b16 %v665
        %v1114 = vunpack.c.l.b16 %v666
        %v1115 = vunpack.c.l.b16 %v667
        %v1116 = vunpack.c.l.b16 %v668
        %v1117 = vunpack.c.l.b16 %v669
        %v1118 = vunpack.c.l.b16 %v670
        %v1119 = vunpack.c.l.b16 %v671
        %v1120 = vunpack.c.l.b16 %v672
        %v1121 = vunpack.c.l.b16 %v673
        %v1122 = vunpack.c.l.b16 %v674
        %v1123 = vunpack.c.l.b16 %v675
        %v1124 = vunpack.c.l.b16 %v676
        %v1125 = vunpack.c.l.b16 %v677
        %v1126 = vunpack.c.l.b16 %v678
        %v1127 = vunpack.c.l.b16 %v679
        %v1128 = vunpack.c.l.b16 %v680
        %v1129 = vunpack.c.l.b16 %v681
        %v1130 = vunpack.c.l.b16 %v682
        %v1131 = vunpack.c.l.b16 %v683
        %v1132 = vunpack.c.l.b16 %v684
        %v1133 = vunpack.c.l.b16 %v685
        %v1134 = vunpack.c.l.b16 %v686
        %v1135 = vunpack.c.l.b16 %v687
        %v1136 = vunpack.c.l.b16 %v688
        %v1137 = vunpack.c.l.b16 %v689
        %v1138 = vunpack.c.l.b16 %v690
        %v1139 = vunpack.c.l.b16 %v691
        %v1140 = vunpack.c.l.b16 %v692
        %v1141 = vunpack.c.l.b16 %v693
        %v1142 = vunpack.c.l.b16 %v694
        %v1143 = vunpack.c.l.b16 %v695
        %v1144 = vunpack.c.l.b16 %v696
        %v1145 = vunpack.c.l.b16 %v697
        %v1146 = vunpack.c.l.b16 %v698
        %v1147 = vunpack.c.l.b16 %v699
        %v1148 = vunpack.c.l.b16 %v700
        %v1149 = vunpack.c.l.b16 %v701
        %v1150 = vunpack.c.l.b16 %v702
        %v1151 = vunpack.c.l.b16 %v703
        %v1152 = vunpack.c.l.b16 %v704
        %v1153 = vunpack.c.l.b16 %v705
        %v1154 = vunpack.c.l.b16 %v706
        %v1155 = vunpack.c.l.b16 %v707
        %v1156 = vunpack.c.l.b16 %v708
        %v1157 = vunpack.c.l.b16 %v709
        %v1158 = vunpack.c.l.b16 %v710
        %v1159 = vunpack.c.l.b16 %v711
        %v1160 = vunpack.c.l.b16 %v712
        %v1161 = vunpack.c.l.b16 %v713
        %v1162 = vunpack.c.l.b16 %v714
        %v1163 = vunpack.c.l.b16 %v715
        %v1164 = vunpack.c.l.b16 %v716
        %v1165 = vunpack.c.l.b16 %v717
        %v1166 = vunpack.c.l.b16 %v718
        %v1167 = vunpack.c.l.b16 %v719
        %v1168 = vunpack.c.l.b16 %v720
        %v1169 = vunpack.c.l.b16 %v721
        %v1170 = vunpack.c.l.b16 %v722
        %v1171 = vunpack.c.l.b16 %v723
        %v1172 = vunpack.c.l.b16 %v724
        %v1173 = vunpack.c.l.b16 %v725
        %v1174 = vunpack.c.l.b16 %v726
        %v1175 = vunpack.c.l.b16 %v727
        %v1176 = vunpack.c.l.b16 %v728
        %v1177 = vunpack.c.l.b16 %v729
        %v1178 = vunpack.c.l.b16 %v730
        %v1179 = vunpack.c.l.b16 %v731
        %v1180 = vunpack.c.l.b16 %v732
        %v1181 = vunpack.c.l.b16 %v733
        %v1182 = vunpack.c.l.b16 %v734
        %v1183 = vunpack.c.l.b16 %v735
        %v1184 = vunpack.c.l.b16 %v736
        %v1185 = vunpack.c.l.b16 %v737
        %v1186 = vunpack.c.l.b16 %v738
        %v1187 = vunpack.c.l.b16 %v739
        %v1188 = vunpack.c.l.b16 %v740
        %v1189 = vunpack.c.l.b16 %v741
        %v1190 = vunpack.c.l.b16 %v742
        %v1191 = vunpack.c.l.b16 %v743
        %v1192 = vunpack.c.l.b16 %v744
        %v1193 = vunpack.c.l.b16 %v745
        %v1194 = vunpack.c.l.b16 %v746
        %v1195 = vunpack.c.l.b16 %v747
        %v1196 = vunpack.c.l.b16 %v748
        %v1197 = vunpack.c.l.b16 %v749
        %v1198 = vunpack.c.l.b16 %v750
        %v1199 = vunpack.c.l.b16 %v751
        %v1200 = vunpack.c.l.b16 %v752
        %v1201 = vunpack.c.l.b16 %v753
        %v1202 = vunpack.c.l.b16 %v754
        %v1203 = vunpack.c.l.b16 %v755
        %v1204 = vunpack.c.l.b16 %v756
        %v1205 = vunpack.c.l.b16 %v757
        %v1206 = vunpack.c.l.b16 %v758
        %v1207 = vunpack.c.l.b16 %v759
        %v1208 = vunpack.c.l.b16 %v760
        %v1209 = vunpack.c.l.b16 %v761
        %v1210 = vunpack.c.l.b16 %v762
        %v1211 = vunpack.c.l.b16 %v763
        %v1212 = vunpack.c.l.b16 %v764
        %v1213 = vunpack.c.l.b16 %v765
        %v1214 = vunpack.c.l.b16 %v766
        %v1215 = vunpack.c.l.b16 %v767
        %v1216 = vunpack.c.l.b16 %v768
        %v1217 = vunpack.c.l.b16 %v769
        %v1218 = vunpack.c.l.b16 %v770
        %v1219 = vunpack.c.l.b16 %v771
        %v1220 = vunpack.c.l.b16 %v772
        %v1221 = vunpack.c.l.b16 %v773
        %v1222 = vunpack.c.l.b16 %v774
        %v1223 = vunpack.c.l.b16 %v775
        %v1224 = vunpack.c.l.b16 %v776
        %v1225 = vunpack.c.l.b16 %v777
        %v1226 = vunpack.c.l.b16 %v778
        %v1227 = vunpack.c.l.b16 %v779
        %v1228 = vunpack.c.l.b16 %v780
        %v1229 = vunpack.c.l.b16 %v781
        %v1230 = vunpack.c.l.b16 %v782
        %v1231 = vunpack.c.l.b16 %v783
        %v1232 = vunpack.c.l.b16 %v784
        %v1233 = vunpack.c.l.b16 %v785
        %v1234 = vunpack.c.l.b16 %v786
        %v1235 = vunpack.c.l.b16 %v787
        %v1236 = vunpack.c.l.b16 %v788
        %v1237 = vunpack.c.l.b16 %v789
        %v1238 = vunpack.c.l.b16 %v790
        %v1239 = vunpack.c.l.b16 %v791
        %v1240 = vunpack.c.l.b16 %v792
        %v1241 = vunpack.c.l.b16 %v793
        %v1242 = vunpack.c.l.b16 %v794
        %v1243 = vunpack.c.l.b16 %v795
        %v1244 = vunpack.c.l.b16 %v796
        %v1245 = vunpack.c.l.b16 %v797
        %v1246 = vunpack.c.l.b16 %v798
        %v1247 = vunpack.c.l.b16 %v799
        %v1248 = vunpack.c.l.b16 %v800
        %v1249 = vunpack.c.l.b16 %v801
        %v1250 = vunpack.c.l.b16 %v802
        %v1251 = vunpack.c.l.b16 %v803
        %v1252 = vunpack.c.l.b16 %v804
        %v1253 = vunpack.c.l.b16 %v805
        %v1254 = vunpack.c.l.b16 %v806
        %v1255 = vunpack.c.l.b16 %v807
        %v1256 = vunpack.c.l.b16 %v808
        %v1257 = vunpack.c.l.b16 %v809
        %v1258 = vunpack.c.l.b16 %v810
        %v1259 = vunpack.c.l.b16 %v811
        %v1260 = vunpack.c.l.b16 %v812
        %v1261 = vunpack.c.l.b16 %v813
        %v1262 = vunpack.c.l.b16 %v814
        %v1263 = vunpack.c.l.b16 %v815
        %v1264 = vunpack.c.l.b16 %v816
        %v1265 = vunpack.c.l.b16 %v817
        %v1266 = vunpack.c.l.b16 %v818
        %v1267 = vunpack.c.l.b16 %v819
        %v1268 = vunpack.c.l.b16 %v820
        %v1269 = vunpack.c.l.b16 %v821
        %v1270 = vunpack.c.l.b16 %v822
        %v1271 = vunpack.c.l.b16 %v823
        %v1272 = vunpack.c.l.b16 %v824
        %v1273 = vunpack.c.l.b16 %v825
        %v1274 = vunpack.c.l.b16 %v826
        %v1275 = vunpack.c.l.b16 %v827
        %v1276 = vunpack.c.l.b16 %v828
        %v1277 = vunpack.c.l.b16 %v829
        %v1278 = vunpack.c.l.b16 %v830
        %v1279 = vunpack.c.l.b16 %v831
        %v1280 = vunpack.c.l.b16 %v832
        %v1281 = vunpack.c.l.b16 %v833
        %v1282 = vpack.c.b16 %v1059, %v1058
        %v1283 = vpack.c.b16 %v1061, %v1060
        %v1284 = vpack.c.b16 %v1063, %v1062
        %v1285 = vpack.c.b16 %v1065, %v1064
        %v1286 = vpack.c.b16 %v1067, %v1066
        %v1287 = vpack.c.b16 %v1069, %v1068
        %v1288 = vpack.c.b16 %v1071, %v1070
        %v1289 = vpack.c.b16 %v1073, %v1072
        %v1290 = vpack.c.b16 %v1075, %v1074
        %v1291 = vpack.c.b16 %v1077, %v1076
        %v1292 = vpack.c.b16 %v1079, %v1078
        %v1293 = vpack.c.b16 %v1081, %v1080
        %v1294 = vpack.c.b16 %v1083, %v1082
        %v1295 = vpack.c.b16 %v1085, %v1084
        %v1296 = vpack.c.b16 %v1087, %v1086
        %v1297 = vpack.c.b16 %v1089, %v1088
        %v1298 = vpack.c.b16 %v1091, %v1090
        %v1299 = vpack.c.b16 %v1093, %v1092
        %v1300 = vpack.c.b16 %v1095, %v1094
        %v1301 = vpack.c.b16 %v1097, %v1096
        %v1302 = vpack.c.b16 %v1099, %v1098
        %v1303 = vpack.c.b16 %v1101, %v1100
        %v1304 = vpack.c.b16 %v1103, %v1102
        %v1305 = vpack.c.b16 %v1105, %v1104
        %v1306 = vpack.c.b16 %v1107, %v1106
        %v1307 = vpack.c.b16 %v1109, %v1108
        %v1308 = vpack.c.b16 %v1111, %v1110
        %v1309 = vpack.c.b16 %v1113, %v1112
        %v1310 = vpack.c.b16 %v1115, %v1114
        %v1311 = vpack.c.b16 %v1117, %v1116
        %v1312 = vpack.c.b16 %v1119, %v1118
        %v1313 = vpack.c.b16 %v1121, %v1120
        %v1314 = vpack.c.b16 %v1123, %v1122
        %v1315 = vpack.c.b16 %v1125, %v1124
        %v1316 = vpack.c.b16 %v1127, %v1126
        %v1317 = vpack.c.b16 %v1129, %v1128
        %v1318 = vpack.c.b16 %v1131, %v1130
        %v1319 = vpack.c.b16 %v1133, %v1132
        %v1320 = vpack.c.b16 %v1135, %v1134
        %v1321 = vpack.c.b16 %v1137, %v1136
        %v1322 = vpack.c.b16 %v1139, %v1138
        %v1323 = vpack.c.b16 %v1141, %v1140
        %v1324 = vpack.c.b16 %v1143, %v1142
        %v1325 = vpack.c.b16 %v1145, %v1144
        %v1326 = vpack.c.b16 %v1147, %v1146
        %v1327 = vpack.c.b16 %v1149, %v1148
        %v1328 = vpack.c.b16 %v1151, %v1150
        %v1329 = vpack.c.b16 %v1153, %v1152
        %v1330 = vpack.c.b16 %v1155, %v1154
        %v1331 = vpack.c.b16 %v1157, %v1156
        %v1332 = vpack.c.b16 %v1159, %v1158
        %v1333 = vpack.c.b16 %v1161, %v1160
        %v1334 = vpack.c.b16 %v1163, %v1162
        %v1335 = vpack.c.b16 %v1165, %v1164
        %v1336 = vpack.c.b16 %v1167, %v1166
        %v1337 = vpack.c.b16 %v1169, %v1168
        %v1338 = vpack.c.b16 %v1171, %v1170
        %v1339 = vpack.c.b16 %v1173, %v1172
        %v1340 = vpack.c.b16 %v1175, %v1174
        %v1341 = vpack.c.b16 %v1177, %v1176
        %v1342 = vpack.c.b16 %v1179, %v1178
        %v1343 = vpack.c.b16 %v1181, %v1180
        %v1344 = vpack.c.b16 %v1183, %v1182
        %v1345 = vpack.c.b16 %v1185, %v1184
        %v1346 = vpack.c.b16 %v1187, %v1186
        %v1347 = vpack.c.b16 %v1189, %v1188
        %v1348 = vpack.c.b16 %v1191, %v1190
        %v1349 = vpack.c.b16 %v1193, %v1192
        %v1350 = vpack.c.b16 %v1195, %v1194
        %v1351 = vpack.c.b16 %v1197, %v1196
        %v1352 = vpack.c.b16 %v1199, %v1198
        %v1353 = vpack.c.b16 %v1201, %v1200
        %v1354 = vpack.c.b16 %v1203, %v1202
        %v1355 = vpack.c.b16 %v1205, %v1204
        %v1356 = vpack.c.b16 %v1207, %v1206
        %v1357 = vpack.c.b16 %v1209, %v1208
        %v1358 = vpack.c.b16 %v1211, %v1210
        %v1359 = vpack.c.b16 %v1213, %v1212
        %v1360 = vpack.c.b16 %v1215, %v1214
        %v1361 = vpack.c.b16 %v1217, %v1216
        %v1362 = vpack.c.b16 %v1219, %v1218
        %v1363 = vpack.c.b16 %v1221, %v1220
        %v1364 = vpack.c.b16 %v1223, %v1222
        %v1365 = vpack.c.b16 %v1225, %v1224
        %v1366 = vpack.c.b16 %v1227, %v1226
        %v1367 = vpack.c.b16 %v1229, %v1228
        %v1368 = vpack.c.b16 %v1231, %v1230
        %v1369 = vpack.c.b16 %v1233, %v1232
        %v1370 = vpack.c.b16 %v1235, %v1234
        %v1371 = vpack.c.b16 %v1237, %v1236
        %v1372 = vpack.c.b16 %v1239, %v1238
        %v1373 = vpack.c.b16 %v1241, %v1240
        %v1374 = vpack.c.b16 %v1243, %v1242
        %v1375 = vpack.c.b16 %v1245, %v1244
        %v1376 = vpack.c.b16 %v1247, %v1246
        %v1377 = vpack.c.b16 %v1249, %v1248
        %v1378 = vpack.c.b16 %v1251, %v1250
        %v1379 = vpack.c.b16 %v1253, %v1252
        %v1380 = vpack.c.b16 %v1255, %v1254
        %v1381 = vpack.c.b16 %v1257, %v1256
        %v1382 = vpack.c.b16 %v1259, %v1258
        %v1383 = vpack.c.b16 %v1261, %v1260
        %v1384 = vpack.c.b16 %v1263, %v1262
        %v1385 = vpack.c.b16 %v1265, %v1264
        %v1386 = vpack.c.b16 %v1267, %v1266
        %v1387 = vpack.c.b16 %v1269, %v1268
        %v1388 = vpack.c.b16 %v1271, %v1270
        %v1389 = vpack.c.b16 %v1273, %v1272
        %v1390 = vpack.c.b16 %v1275, %v1274
        %v1391 = vpack.c.b16 %v1277, %v1276
        %v1392 = vpack.c.b16 %v1279, %v1278
        %v1393 = vpack.c.b16 %v1281, %v1280
        %1506 = vmatprep.subr.bf16.mxu0 0
        %1507 = vmatpush1.bf16.msra.mxu0 %v1282
        %1508 = vmatprep.subr.bf16.mxu0 0
        %1509 = vmatpush1.bf16.msra.mxu0 %v1283
        %1510 = vmatprep.subr.bf16.mxu0 0
        %1511 = vmatpush1.bf16.msra.mxu0 %v1284
        %1512 = vmatprep.subr.bf16.mxu0 0
        %1513 = vmatpush1.bf16.msra.mxu0 %v1285
        %1514 = vmatprep.subr.bf16.mxu0 0
        %1515 = vmatpush1.bf16.msra.mxu0 %v1286
        %1516 = vmatprep.subr.bf16.mxu0 0
        %1517 = vmatpush1.bf16.msra.mxu0 %v1287
        %1518 = vmatprep.subr.bf16.mxu0 0
        %1519 = vmatpush1.bf16.msra.mxu0 %v1288
        %1520 = vmatprep.subr.bf16.mxu0 0
        %1521 = vmatpush1.bf16.msra.mxu0 %v1289
        %1522 = vmatprep.subr.bf16.mxu0 0
        %1523 = vmatpush1.bf16.msra.mxu0 %v1290
        %1524 = vmatprep.subr.bf16.mxu0 0
        %1525 = vmatpush1.bf16.msra.mxu0 %v1291
        %1526 = vmatprep.subr.bf16.mxu0 0
        %1527 = vmatpush1.bf16.msra.mxu0 %v1292
        %1528 = vmatprep.subr.bf16.mxu0 0
        %1529 = vmatpush1.bf16.msra.mxu0 %v1293
        %1530 = vmatprep.subr.bf16.mxu0 0
        %1531 = vmatpush1.bf16.msra.mxu0 %v1294
        %1532 = vmatprep.subr.bf16.mxu0 0
        %1533 = vmatpush1.bf16.msra.mxu0 %v1295
        %1534 = vmatprep.subr.bf16.mxu0 0
        %1535 = vmatpush1.bf16.msra.mxu0 %v1296
        %1536 = vmatprep.subr.bf16.mxu0 0
        %1537 = vmatpush1.bf16.msra.mxu0 %v1297
        %1538 = vmatprep.mubr.bf16.mxu0 %v487
        %1539 = vmatmul.mubr.bf16.gmra.mrb[0].mxu0 %v480
        %v1540 = vpop.f32.mrb[0].mxu0
        %v1541 = vadd.f32 0.0, %v1540
        %v1542 = vpop.f32.mrb[0].mxu0
        %v1543 = vpop.f32.mrb[0].mxu0
        %v1544 = vadd.f32 0.0, %v1543
        %v1545 = vpop.f32.mrb[0].mxu0
        %1546 = vmatprep.mubr.bf16.mxu0 %v491
        %1547 = vmatmul.mubr.bf16.gmra.mrb[0].mxu0 %v483
        %v1548 = vpop.f32.mrb[0].mxu0
        %v1549 = vadd.f32 0.0, %v1548
        %v1550 = vpop.f32.mrb[0].mxu0
        %v1551 = vpop.f32.mrb[0].mxu0
        %v1552 = vadd.f32 0.0, %v1551
        %v1553 = vpop.f32.mrb[0].mxu0
        %1554 = vdwg.mxu0
        %1555 = vmatprep.subr.bf16.mxu0 0
        %1556 = vmatpush1.bf16.msra.mxu0 %v1298
        %1557 = vmatprep.subr.bf16.mxu0 0
        %1558 = vmatpush1.bf16.msra.mxu0 %v1299
        %1559 = vmatprep.subr.bf16.mxu0 0
        %1560 = vmatpush1.bf16.msra.mxu0 %v1300
        %1561 = vmatprep.subr.bf16.mxu0 0
        %1562 = vmatpush1.bf16.msra.mxu0 %v1301
        %1563 = vmatprep.subr.bf16.mxu0 0
        %1564 = vmatpush1.bf16.msra.mxu0 %v1302
        %1565 = vmatprep.subr.bf16.mxu0 0
        %1566 = vmatpush1.bf16.msra.mxu0 %v1303
        %1567 = vmatprep.subr.bf16.mxu0 0
        %1568 = vmatpush1.bf16.msra.mxu0 %v1304
        %1569 = vmatprep.subr.bf16.mxu0 0
        %1570 = vmatpush1.bf16.msra.mxu0 %v1305
        %1571 = vmatprep.subr.bf16.mxu0 0
        %1572 = vmatpush1.bf16.msra.mxu0 %v1306
        %1573 = vmatprep.subr.bf16.mxu0 0
        %1574 = vmatpush1.bf16.msra.mxu0 %v1307
        %1575 = vmatprep.subr.bf16.mxu0 0
        %1576 = vmatpush1.bf16.msra.mxu0 %v1308
        %1577 = vmatprep.subr.bf16.mxu0 0
        %1578 = vmatpush1.bf16.msra.mxu0 %v1309
        %1579 = vmatprep.subr.bf16.mxu0 0
        %1580 = vmatpush1.bf16.msra.mxu0 %v1310
        %1581 = vmatprep.subr.bf16.mxu0 0
        %1582 = vmatpush1.bf16.msra.mxu0 %v1311
        %1583 = vmatprep.subr.bf16.mxu0 0
        %1584 = vmatpush1.bf16.msra.mxu0 %v1312
        %1585 = vmatprep.subr.bf16.mxu0 0
        %1586 = vmatpush1.bf16.msra.mxu0 %v1313
        %1587 = vmatprep.mubr.bf16.mxu0 %v503
        %1588 = vmatmul.mubr.bf16.gmra.mrb[0].mxu0 %v495
        %v1589 = vpop.f32.mrb[0].mxu0
        %v1590 = vadd.f32 %v1541, %v1589
        %v1591 = vpop.f32.mrb[0].mxu0
        %v1592 = vpop.f32.mrb[0].mxu0
        %v1593 = vadd.f32 %v1544, %v1592
        %v1594 = vpop.f32.mrb[0].mxu0
        %1595 = vmatprep.mubr.bf16.mxu0 %v507
        %1596 = vmatmul.mubr.bf16.gmra.mrb[0].mxu0 %v499
        %v1597 = vpop.f32.mrb[0].mxu0
        %v1598 = vadd.f32 %v1549, %v1597
        %v1599 = vpop.f32.mrb[0].mxu0
        %v1600 = vpop.f32.mrb[0].mxu0
        %v1601 = vadd.f32 %v1552, %v1600
        %v1602 = vpop.f32.mrb[0].mxu0
        %1603 = vdwg.mxu0
        %1604 = vmatprep.subr.bf16.mxu0 0
        %1605 = vmatpush1.bf16.msra.mxu0 %v1314
        %1606 = vmatprep.subr.bf16.mxu0 0
        %1607 = vmatpush1.bf16.msra.mxu0 %v1315
        %1608 = vmatprep.subr.bf16.mxu0 0
        %1609 = vmatpush1.bf16.msra.mxu0 %v1316
        %1610 = vmatprep.subr.bf16.mxu0 0
        %1611 = vmatpush1.bf16.msra.mxu0 %v1317
        %1612 = vmatprep.subr.bf16.mxu0 0
        %1613 = vmatpush1.bf16.msra.mxu0 %v1318
        %1614 = vmatprep.subr.bf16.mxu0 0
        %1615 = vmatpush1.bf16.msra.mxu0 %v1319
        %1616 = vmatprep.subr.bf16.mxu0 0
        %1617 = vmatpush1.bf16.msra.mxu0 %v1320
        %1618 = vmatprep.subr.bf16.mxu0 0
        %1619 = vmatpush1.bf16.msra.mxu0 %v1321
        %1620 = vmatprep.subr.bf16.mxu0 0
        %1621 = vmatpush1.bf16.msra.mxu0 %v1322
        %1622 = vmatprep.subr.bf16.mxu0 0
        %1623 = vmatpush1.bf16.msra.mxu0 %v1323
        %1624 = vmatprep.subr.bf16.mxu0 0
        %1625 = vmatpush1.bf16.msra.mxu0 %v1324
        %1626 = vmatprep.subr.bf16.mxu0 0
        %1627 = vmatpush1.bf16.msra.mxu0 %v1325
        %1628 = vmatprep.subr.bf16.mxu0 0
        %1629 = vmatpush1.bf16.msra.mxu0 %v1326
        %1630 = vmatprep.subr.bf16.mxu0 0
        %1631 = vmatpush1.bf16.msra.mxu0 %v1327
        %1632 = vmatprep.subr.bf16.mxu0 0
        %1633 = vmatpush1.bf16.msra.mxu0 %v1328
        %1634 = vmatprep.subr.bf16.mxu0 0
        %1635 = vmatpush1.bf16.msra.mxu0 %v1329
        %1636 = vmatprep.mubr.bf16.mxu0 %v519
        %1637 = vmatmul.mubr.bf16.gmra.mrb[0].mxu0 %v511
        %v1638 = vpop.f32.mrb[0].mxu0
        %v1639 = vadd.f32 %v1590, %v1638
        %v1640 = vpop.f32.mrb[0].mxu0
        %v1641 = vpop.f32.mrb[0].mxu0
        %v1642 = vadd.f32 %v1593, %v1641
        %v1643 = vpop.f32.mrb[0].mxu0
        %1644 = vmatprep.mubr.bf16.mxu0 %v523
        %1645 = vmatmul.mubr.bf16.gmra.mrb[0].mxu0 %v515
        %v1646 = vpop.f32.mrb[0].mxu0
        %v1647 = vadd.f32 %v1598, %v1646
        %v1648 = vpop.f32.mrb[0].mxu0
        %v1649 = vpop.f32.mrb[0].mxu0
        %v1650 = vadd.f32 %v1601, %v1649
        %v1651 = vpop.f32.mrb[0].mxu0
        %1652 = vdwg.mxu0
        %1653 = vmatprep.subr.bf16.mxu0 0
        %1654 = vmatpush1.bf16.msra.mxu0 %v1330
        %1655 = vmatprep.subr.bf16.mxu0 0
        %1656 = vmatpush1.bf16.msra.mxu0 %v1331
        %1657 = vmatprep.subr.bf16.mxu0 0
        %1658 = vmatpush1.bf16.msra.mxu0 %v1332
        %1659 = vmatprep.subr.bf16.mxu0 0
        %1660 = vmatpush1.bf16.msra.mxu0 %v1333
        %1661 = vmatprep.subr.bf16.mxu0 0
        %1662 = vmatpush1.bf16.msra.mxu0 %v1334
        %1663 = vmatprep.subr.bf16.mxu0 0
        %1664 = vmatpush1.bf16.msra.mxu0 %v1335
        %1665 = vmatprep.subr.bf16.mxu0 0
        %1666 = vmatpush1.bf16.msra.mxu0 %v1336
        %1667 = vmatprep.subr.bf16.mxu0 0
        %1668 = vmatpush1.bf16.msra.mxu0 %v1337
        %1669 = vmatprep.subr.bf16.mxu0 0
        %1670 = vmatpush1.bf16.msra.mxu0 %v1338
        %1671 = vmatprep.subr.bf16.mxu0 0
        %1672 = vmatpush1.bf16.msra.mxu0 %v1339
        %1673 = vmatprep.subr.bf16.mxu0 0
        %1674 = vmatpush1.bf16.msra.mxu0 %v1340
        %1675 = vmatprep.subr.bf16.mxu0 0
        %1676 = vmatpush1.bf16.msra.mxu0 %v1341
        %1677 = vmatprep.subr.bf16.mxu0 0
        %1678 = vmatpush1.bf16.msra.mxu0 %v1342
        %1679 = vmatprep.subr.bf16.mxu0 0
        %1680 = vmatpush1.bf16.msra.mxu0 %v1343
        %1681 = vmatprep.subr.bf16.mxu0 0
        %1682 = vmatpush1.bf16.msra.mxu0 %v1344
        %1683 = vmatprep.subr.bf16.mxu0 0
        %1684 = vmatpush1.bf16.msra.mxu0 %v1345
        %1685 = vmatprep.mubr.bf16.mxu0 %v535
        %1686 = vmatmul.mubr.bf16.gmra.mrb[0].mxu0 %v527
        %v1687 = vpop.f32.mrb[0].mxu0
        %v1688 = vadd.f32 %v1639, %v1687
        %v1689 = vpop.f32.mrb[0].mxu0
        %v1690 = vpop.f32.mrb[0].mxu0
        %v1691 = vadd.f32 %v1642, %v1690
        %v1692 = vpop.f32.mrb[0].mxu0
        %1693 = vmatprep.mubr.bf16.mxu0 %v539
        %1694 = vmatmul.mubr.bf16.gmra.mrb[0].mxu0 %v531
        %v1695 = vpop.f32.mrb[0].mxu0
        %v1696 = vadd.f32 %v1647, %v1695
        %v1697 = vpop.f32.mrb[0].mxu0
        %v1698 = vpop.f32.mrb[0].mxu0
        %v1699 = vadd.f32 %v1650, %v1698
        %v1700 = vpop.f32.mrb[0].mxu0
        %1701 = vdwg.mxu0
        %1702 = vmatprep.subr.bf16.mxu0 0
        %1703 = vmatpush1.bf16.msra.mxu0 %v1346
        %1704 = vmatprep.subr.bf16.mxu0 0
        %1705 = vmatpush1.bf16.msra.mxu0 %v1347
        %1706 = vmatprep.subr.bf16.mxu0 0
        %1707 = vmatpush1.bf16.msra.mxu0 %v1348
        %1708 = vmatprep.subr.bf16.mxu0 0
        %1709 = vmatpush1.bf16.msra.mxu0 %v1349
        %1710 = vmatprep.subr.bf16.mxu0 0
        %1711 = vmatpush1.bf16.msra.mxu0 %v1350
        %1712 = vmatprep.subr.bf16.mxu0 0
        %1713 = vmatpush1.bf16.msra.mxu0 %v1351
        %1714 = vmatprep.subr.bf16.mxu0 0
        %1715 = vmatpush1.bf16.msra.mxu0 %v1352
        %1716 = vmatprep.subr.bf16.mxu0 0
        %1717 = vmatpush1.bf16.msra.mxu0 %v1353
        %1718 = vmatprep.subr.bf16.mxu0 0
        %1719 = vmatpush1.bf16.msra.mxu0 %v1354
        %1720 = vmatprep.subr.bf16.mxu0 0
        %1721 = vmatpush1.bf16.msra.mxu0 %v1355
        %1722 = vmatprep.subr.bf16.mxu0 0
        %1723 = vmatpush1.bf16.msra.mxu0 %v1356
        %1724 = vmatprep.subr.bf16.mxu0 0
        %1725 = vmatpush1.bf16.msra.mxu0 %v1357
        %1726 = vmatprep.subr.bf16.mxu0 0
        %1727 = vmatpush1.bf16.msra.mxu0 %v1358
        %1728 = vmatprep.subr.bf16.mxu0 0
        %1729 = vmatpush1.bf16.msra.mxu0 %v1359
        %1730 = vmatprep.subr.bf16.mxu0 0
        %1731 = vmatpush1.bf16.msra.mxu0 %v1360
        %1732 = vmatprep.subr.bf16.mxu0 0
        %1733 = vmatpush1.bf16.msra.mxu0 %v1361
        %1734 = vmatprep.mubr.bf16.mxu0 %v491
        %1735 = vmatmul.mubr.bf16.gmra.mrb[0].mxu0 %v483
        %v1736 = vpop.f32.mrb[0].mxu0
        %v1737 = vadd.f32 %v1688, %v1736
        %v1738 = vpop.f32.mrb[0].mxu0
        %v1739 = vpop.f32.mrb[0].mxu0
        %v1740 = vadd.f32 %v1691, %v1739
        %v1741 = vpop.f32.mrb[0].mxu0
        %1742 = vmatprep.mubr.bf16.mxu0 %v590
        %1743 = vmatmul.mubr.bf16.gmra.mrb[0].mxu0 %v586
        %v1744 = vpop.f32.mrb[0].mxu0
        %v1745 = vadd.f32 %v1696, %v1744
        %v1746 = vpop.f32.mrb[0].mxu0
        %v1747 = vpop.f32.mrb[0].mxu0
        %v1748 = vadd.f32 %v1699, %v1747
        %v1749 = vpop.f32.mrb[0].mxu0
        %1750 = vdwg.mxu0
        %1751 = vmatprep.subr.bf16.mxu0 0
        %1752 = vmatpush1.bf16.msra.mxu0 %v1362
        %1753 = vmatprep.subr.bf16.mxu0 0
        %1754 = vmatpush1.bf16.msra.mxu0 %v1363
        %1755 = vmatprep.subr.bf16.mxu0 0
        %1756 = vmatpush1.bf16.msra.mxu0 %v1364
        %1757 = vmatprep.subr.bf16.mxu0 0
        %1758 = vmatpush1.bf16.msra.mxu0 %v1365
        %1759 = vmatprep.subr.bf16.mxu0 0
        %1760 = vmatpush1.bf16.msra.mxu0 %v1366
        %1761 = vmatprep.subr.bf16.mxu0 0
        %1762 = vmatpush1.bf16.msra.mxu0 %v1367
        %1763 = vmatprep.subr.bf16.mxu0 0
        %1764 = vmatpush1.bf16.msra.mxu0 %v1368
        %1765 = vmatprep.subr.bf16.mxu0 0
        %1766 = vmatpush1.bf16.msra.mxu0 %v1369
        %1767 = vmatprep.subr.bf16.mxu0 0
        %1768 = vmatpush1.bf16.msra.mxu0 %v1370
        %1769 = vmatprep.subr.bf16.mxu0 0
        %1770 = vmatpush1.bf16.msra.mxu0 %v1371
        %1771 = vmatprep.subr.bf16.mxu0 0
        %1772 = vmatpush1.bf16.msra.mxu0 %v1372
        %1773 = vmatprep.subr.bf16.mxu0 0
        %1774 = vmatpush1.bf16.msra.mxu0 %v1373
        %1775 = vmatprep.subr.bf16.mxu0 0
        %1776 = vmatpush1.bf16.msra.mxu0 %v1374
        %1777 = vmatprep.subr.bf16.mxu0 0
        %1778 = vmatpush1.bf16.msra.mxu0 %v1375
        %1779 = vmatprep.subr.bf16.mxu0 0
        %1780 = vmatpush1.bf16.msra.mxu0 %v1376
        %1781 = vmatprep.subr.bf16.mxu0 0
        %1782 = vmatpush1.bf16.msra.mxu0 %v1377
        %1783 = vmatprep.mubr.bf16.mxu0 %v507
        %1784 = vmatmul.mubr.bf16.gmra.mrb[0].mxu0 %v499
        %v1785 = vpop.f32.mrb[0].mxu0
        %v1786 = vadd.f32 %v1737, %v1785
        %v1787 = vpop.f32.mrb[0].mxu0
        %v1788 = vpop.f32.mrb[0].mxu0
        %v1789 = vadd.f32 %v1740, %v1788
        %v1790 = vpop.f32.mrb[0].mxu0
        %1791 = vmatprep.mubr.bf16.mxu0 %v598
        %1792 = vmatmul.mubr.bf16.gmra.mrb[0].mxu0 %v594
        %v1793 = vpop.f32.mrb[0].mxu0
        %v1794 = vadd.f32 %v1745, %v1793
        %v1795 = vpop.f32.mrb[0].mxu0
        %v1796 = vpop.f32.mrb[0].mxu0
        %v1797 = vadd.f32 %v1748, %v1796
        %v1798 = vpop.f32.mrb[0].mxu0
        %1799 = vdwg.mxu0
        %1800 = vmatprep.subr.bf16.mxu0 0
        %1801 = vmatpush1.bf16.msra.mxu0 %v1378
        %1802 = vmatprep.subr.bf16.mxu0 0
        %1803 = vmatpush1.bf16.msra.mxu0 %v1379
        %1804 = vmatprep.subr.bf16.mxu0 0
        %1805 = vmatpush1.bf16.msra.mxu0 %v1380
        %1806 = vmatprep.subr.bf16.mxu0 0
        %1807 = vmatpush1.bf16.msra.mxu0 %v1381
        %1808 = vmatprep.subr.bf16.mxu0 0
        %1809 = vmatpush1.bf16.msra.mxu0 %v1382
        %1810 = vmatprep.subr.bf16.mxu0 0
        %1811 = vmatpush1.bf16.msra.mxu0 %v1383
        %1812 = vmatprep.subr.bf16.mxu0 0
        %1813 = vmatpush1.bf16.msra.mxu0 %v1384
        %1814 = vmatprep.subr.bf16.mxu0 0
        %1815 = vmatpush1.bf16.msra.mxu0 %v1385
        %1816 = vmatprep.subr.bf16.mxu0 0
        %1817 = vmatpush1.bf16.msra.mxu0 %v1386
        %1818 = vmatprep.subr.bf16.mxu0 0
        %1819 = vmatpush1.bf16.msra.mxu0 %v1387
        %1820 = vmatprep.subr.bf16.mxu0 0
        %1821 = vmatpush1.bf16.msra.mxu0 %v1388
        %1822 = vmatprep.subr.bf16.mxu0 0
        %1823 = vmatpush1.bf16.msra.mxu0 %v1389
        %1824 = vmatprep.subr.bf16.mxu0 0
        %1825 = vmatpush1.bf16.msra.mxu0 %v1390
        %1826 = vmatprep.subr.bf16.mxu0 0
        %1827 = vmatpush1.bf16.msra.mxu0 %v1391
        %1828 = vmatprep.subr.bf16.mxu0 0
        %1829 = vmatpush1.bf16.msra.mxu0 %v1392
        %1830 = vmatprep.subr.bf16.mxu0 0
        %1831 = vmatpush1.bf16.msra.mxu0 %v1393
        %1832 = vmatprep.mubr.bf16.mxu0 %v605
        %1833 = vmatmul.mubr.bf16.gmra.mrb[0].mxu0 %v515
        %v1834 = vpop.f32.mrb[0].mxu0
        %v1835 = vadd.f32 %v1786, %v1834
        %v1836 = vpop.f32.mrb[0].mxu0
        %v1837 = vpop.f32.mrb[0].mxu0
        %v1838 = vadd.f32 %v1789, %v1837
        %v1839 = vpop.f32.mrb[0].mxu0
        %1840 = vmatprep.mubr.bf16.mxu0 %v608
        %1841 = vmatmul.mubr.bf16.gmra.mrb[0].mxu0 %v602
        %v1842 = vpop.f32.mrb[0].mxu0
        %v1843 = vadd.f32 %v1794, %v1842
        %v1844 = vpop.f32.mrb[0].mxu0
        %v1845 = vpop.f32.mrb[0].mxu0
        %v1846 = vadd.f32 %v1797, %v1845
        %v1847 = vpop.f32.mrb[0].mxu0
        %1848 = vdwg.mxu0
        %v1849 = vmax.f32 %v1835, 0.0
        %v1850 = vmax.f32 %v1838, 0.0
        %v1851 = vmax.f32 %v1843, 0.0
        %v1852 = vmax.f32 %v1846, 0.0
        %1853 = vst [vmem:[%s267] sm:$0xff] %v1849
        %1854 = vst [vmem:[%s267 + $0x8] sm:$0xff] %v1850
        %1855 = vst [vmem:[%s267 + $0x10] sm:$0xff] %v1851
        %1856 = vst [vmem:[%s267 + $0x18] sm:$0xff] %v1852
        %s1857 = sand.u32 %s124, 1
        %s1858 = scalar_lea.sflag [#allocation4], %s1857
        %s1859 = sand.u32 %s124, 1
        %s1860 = smul.addr %s1859, 32
        %s1861 = scalar_lea.vmem [#allocation8], %s1860
        // Predicated region
        $region45: #{tpu_custom_call.1} parent=31 // pred_check
          %p1862 = pneg %p134
        $region46: #{tpu_custom_call.1} parent=31 // pred_check_branch
          %1864 = sbr.rel (%p1862) target = $region48
        $region47: #{tpu_custom_call.1} parent=31 // pred_region
          %s1865 = smul.u32 4, %s28
          %s1867 = ssub.s32 512, 512
          %1868 = vsyncadd %s1858, %s1867
          %s1869 = smul.addr %s27, 4
          %s1870 = sadd.s32 %s1865, %s1869
          %s1871 = smul.addr %s1870, 128
          %s1872 = scalar_lea.hbm %s3, %s1871
          %s1873 = sshll.u32 %s1861, 4
          %s1874 = int_to_ptr.vmem [resolvable:$true] %s1873
          %1879 = dma.vmem_to_hbm [thread:$0]  %s1874, 512, %s1872, %s1858, 128, 128, 8
        $region48: #{tpu_custom_call.1} parent=31 // pred_fallthru
          _
      $region32: #{tpu_custom_call.1} parent=5 // pred_fallthru
        _
      %p1880 = scmp.le.s32.totalorder 2, %s18
      // Predicated region
      $region49: #{tpu_custom_call.1} parent=5 // pred_check
        %p1881 = pneg %p1880
      $region50: #{tpu_custom_call.1} parent=5 // pred_check_branch
        %1883 = sbr.rel (%p1881) target = $region52
      $region51: #{tpu_custom_call.1} parent=5 // pred_region
        %s1884 = ssub.s32 %s18, 2
        // Predicated region
        $region53: #{tpu_custom_call.1} parent=51 // pred_check
          %p1885 = pneg %p140
        $region54: #{tpu_custom_call.1} parent=51 // pred_check_branch
          %1887 = sbr.rel (%p1885) target = $region56
        $region55: #{tpu_custom_call.1} parent=51 // pred_region
          %s1888 = sand.u32 %s125, 1
          %s1889 = scalar_lea.sflag [#allocation4], %s1888
          %s1890 = sand.u32 %s125, 1
          %s1891 = smul.addr %s1890, 32
          %s1892 = scalar_lea.vmem [#allocation8], %s1891
          %1893 = dma.done %s1889, 512
        $region56: #{tpu_custom_call.1} parent=51 // pred_fallthru
          _
      $region52: #{tpu_custom_call.1} parent=5 // pred_fallthru
        _
    $region6: #{tpu_custom_call.1} parent=1 // loop_footer
      %s22 = sadd.s32 1, %s18
    $region7: #{tpu_custom_call.1} parent=1 // loop_footer_branch
      %17 = sbr.rel target = $region3
    $region8: #{tpu_custom_call.1} parent=1 // loop_exit
      _
    %1894 = vsyncpa [#allocation3], 1
    %s1895 = scalar_lea.sflag [#allocation3], 1
    %1896 = vsyncpa %s1895, 1
    %1897 = vsyncpa [#allocation6], 1
    %s1898 = scalar_lea.sflag [#allocation6], 1
    %1899 = vsyncpa %s1898, 1
    %1900 = vsyncpa [#allocation4], 1
    %s1901 = scalar_lea.sflag [#allocation4], 1
    %1902 = vsyncpa %s1901, 1

</llo_original>
